<compile_context>
chip_gen: v7x
topology: tpu7x:2x2x1
jax: 0.10.0
libtpu: 0.0.40
codegen_flags: <defaults>
</compile_context>

<pallas_src>
import jax
import jax.numpy as jnp
from jax import lax
from jax.experimental import pallas as pl
from jax.experimental.pallas import tpu as pltpu

EMB_DIM = 1024
PREDICT_HIDDEN = 512
OUT_DIM = 1

# TODO(synk): GNN(node_feat, edge_feat) is not defined in the provided module
# source; its readout embedding [B, 1024] is taken as the kernel input instead.


def _round_up(x, m):
    return ((x + m - 1) // m) * m


def _predict_mlp_kernel(x_ref, w1_ref, b1_ref, a1_ref,
                        w2_ref, b2_ref, a2_ref,
                        w3_ref, b3_ref, o_ref):
    # x tile: [TB, 1024] bf16 (cast happens in the wrapper), f32 accumulation.
    x = x_ref[...]

    # --- Linear(1024, 512) + PReLU (dropout = identity in eval) ---
    h1 = jnp.dot(x, w1_ref[...], preferred_element_type=jnp.float32)
    h1 = h1 + b1_ref[...]                      # broadcast [1, 512]
    a1 = a1_ref[0, 0]                          # SMEM scalar
    h1 = jnp.where(h1 > 0, h1, a1 * h1)        # PReLU (single param), f32 on VPU

    # --- Linear(512, 512) + PReLU ---
    h2 = jnp.dot(h1.astype(jnp.bfloat16), w2_ref[...],
                 preferred_element_type=jnp.float32)
    h2 = h2 + b2_ref[...]
    a2 = a2_ref[0, 0]                          # SMEM scalar
    h2 = jnp.where(h2 > 0, h2, a2 * h2)

    # --- Linear(512, 1) as (1,512) @ (TB,512)^T -> (1, TB) ---
    # Lane-dense result: the epilogue store is an unmasked vst instead of the
    # masked (TB, 1) column store.
    out = lax.dot_general(w3_ref[...], h2, (((1,), (1,)), ((), ())),
                          preferred_element_type=jnp.float32)   # [1, TB]
    o_ref[...] = out + b3_ref[0, 0]            # SMEM scalar bias


def _choose_tiling(B):
    """Pick (TB, padded_B). Single tile for small B, big tiles for large B."""
    if B <= 512:
        tb = max(8, _round_up(B, 8))           # one grid step, no step overhead
        return tb, tb
    # Keep TB >= 256 (fills v6e/v7x 256-wide MXU rows; also fine on v5e) and
    # pick the candidate that minimizes batch padding waste.
    best_tb, best_bp = None, None
    for tb in (512, 256):
        bp = _round_up(B, tb)
        if best_bp is None or bp < best_bp:
            best_tb, best_bp = tb, bp
    return best_tb, best_bp


def predict_head(graph_feats, params):
    """graph_feats: [B, EMB_DIM] f32 (or bf16) -> [B, OUT_DIM] f32."""
    B = graph_feats.shape[0]
    (w1, b1, a1, w2, b2, a2, w3, b3) = params

    TB, Bp = _choose_tiling(B)
    # bf16 activation stream: halves the dominant HBM traffic for large B and
    # is numerically identical to casting inside the kernel.
    x = graph_feats.astype(jnp.bfloat16)
    if Bp != B:
        x = jnp.pad(x, ((0, Bp - B), (0, 0)))
    n_steps = Bp // TB
    grid = (n_steps,)

    # Weights/biases stay resident in VMEM; constant index_map + single buffer.
    resident = lambda shape: pl.BlockSpec(shape, lambda i: (0, 0),
                                          pipeline_mode=pl.Buffered(1))
    smem_scalar = pl.BlockSpec(memory_space=pltpu.MemorySpace.SMEM)

    # Only let megacore shard the batch axis when each core gets several tiles;
    # otherwise sharding just duplicates the resident-weight DMA on v7x.
    dims = ("parallel",) if n_steps >= 4 else ("arbitrary",)

    out = pl.pallas_call(
        _predict_mlp_kernel,
        out_shape=jax.ShapeDtypeStruct((1, Bp), jnp.float32),
        grid=grid,
        in_specs=[
            pl.BlockSpec((TB, EMB_DIM), lambda i: (i, 0)),       # x tile (bf16)
            resident((EMB_DIM, PREDICT_HIDDEN)),                 # w1 (bf16)
            resident((1, PREDICT_HIDDEN)),                       # b1
            smem_scalar,                                         # a1 (PReLU)
            resident((PREDICT_HIDDEN, PREDICT_HIDDEN)),          # w2 (bf16)
            resident((1, PREDICT_HIDDEN)),                       # b2
            smem_scalar,                                         # a2 (PReLU)
            resident((1, PREDICT_HIDDEN)),                       # w3 row (f32)
            smem_scalar,                                         # b3
        ],
        out_specs=pl.BlockSpec((1, TB), lambda i: (0, i)),       # lane-dense out
        compiler_params=pltpu.CompilerParams(
            dimension_semantics=dims,
            vmem_limit_bytes=32 << 20,
        ),
    )(x, w1, b1, a1, w2, b2, a2, w3, b3)
    return out[0, :B].reshape(B, OUT_DIM)


def init_params(key):
    """Deterministic parameter init mimicking nn.Linear / nn.PReLU defaults."""
    k1, k2, k3, k4, k5, k6 = jax.random.split(key, 6)

    def linear(kw, kb, fan_in, fan_out):
        bound = 1.0 / jnp.sqrt(fan_in)
        w = jax.random.uniform(kw, (fan_in, fan_out), jnp.float32, -bound, bound)
        b = jax.random.uniform(kb, (1, fan_out), jnp.float32, -bound, bound)
        return w, b

    w1, b1 = linear(k1, k2, EMB_DIM, PREDICT_HIDDEN)
    w2, b2 = linear(k3, k4, PREDICT_HIDDEN, PREDICT_HIDDEN)
    w3, b3 = linear(k5, k6, PREDICT_HIDDEN, OUT_DIM)
    # Weights of the two big matmuls stored bf16 (MXU-native, halves DMA).
    w1 = w1.astype(jnp.bfloat16)
    w2 = w2.astype(jnp.bfloat16)
    # Final layer stored as a [1, 512] f32 row (consumed by a (1,512)@(TB,512)^T dot).
    w3 = w3.reshape(1, PREDICT_HIDDEN).astype(jnp.float32)
    b3 = b3.reshape(1, 1).astype(jnp.float32)
    # nn.PReLU() default: single learnable parameter initialized to 0.25
    a1 = jnp.full((1, 1), 0.25, jnp.float32)
    a2 = jnp.full((1, 1), 0.25, jnp.float32)
    return (w1, b1, a1, w2, b2, a2, w3, b3)


def reference(graph_feats, params):
    """Pure-JAX reference mirroring the kernel's dtype behaviour."""
    (w1, b1, a1, w2, b2, a2, w3, b3) = params
    x = graph_feats.astype(jnp.bfloat16)
    h1 = jnp.dot(x, w1, preferred_element_type=jnp.float32) + b1
    h1 = jnp.where(h1 > 0, h1, a1[0, 0] * h1)
    h2 = jnp.dot(h1.astype(jnp.bfloat16), w2,
                 preferred_element_type=jnp.float32) + b2
    h2 = jnp.where(h2 > 0, h2, a2[0, 0] * h2)
    return jnp.dot(h2, w3.T) + b3[0, 0]


def reference_f32(graph_feats, params):
    """Full-f32 oracle of predict() (PyTorch-equivalent numerics)."""
    (w1, b1, a1, w2, b2, a2, w3, b3) = params
    h1 = graph_feats @ w1.astype(jnp.float32) + b1
    h1 = jnp.where(h1 > 0, h1, a1[0, 0] * h1)
    h2 = h1 @ w2.astype(jnp.float32) + b2
    h2 = jnp.where(h2 > 0, h2, a2[0, 0] * h2)
    return h2 @ w3.T + b3[0, 0]


if __name__ == "__main__":
    key = jax.random.PRNGKey(0)
    kx, kp = jax.random.split(key)

    B = 16  # small batch of graph embeddings -> single-tile path, grid=(1,)
    graph_feats = jax.random.normal(kx, (B, EMB_DIM), jnp.float32)
    params = init_params(kp)

    out = predict_head(graph_feats, params)
    out = jax.block_until_ready(out)
    assert out.shape == (B, OUT_DIM)

    # Tight check against a reference that mirrors the kernel's bf16 choices.
    ref = reference(graph_feats, params)
    assert jnp.allclose(out, ref, atol=1e-3, rtol=1e-3), (
        float(jnp.max(jnp.abs(out - ref))))

    # Loose check against the f32 oracle to bound bf16 drift vs. PyTorch.
    oracle = reference_f32(graph_feats, params)
    assert jnp.allclose(out, oracle, atol=5e-2, rtol=5e-2), (
        float(jnp.max(jnp.abs(out - oracle))))

    print("KERNEL_OK")
</pallas_src>

<mosaic_0001>
module attributes {stable_mosaic.version = 11 : i64} {
  func.func @_predict_mlp_kernel(%arg0: i32, %arg1: memref<16x1024xbf16, #tpu.memory_space<vmem>>, %arg2: memref<1024x512xbf16, #tpu.memory_space<vmem>>, %arg3: memref<1x512xf32, #tpu.memory_space<vmem>>, %arg4: memref<1x1xf32, #tpu.memory_space<smem>>, %arg5: memref<512x512xbf16, #tpu.memory_space<vmem>>, %arg6: memref<1x512xf32, #tpu.memory_space<vmem>>, %arg7: memref<1x1xf32, #tpu.memory_space<smem>>, %arg8: memref<1x512xf32, #tpu.memory_space<vmem>>, %arg9: memref<1x1xf32, #tpu.memory_space<smem>>, %arg10: memref<1x16xf32, #tpu.memory_space<vmem>>) attributes {dimension_semantics = [#tpu.dimension_semantics<arbitrary>], iteration_bounds = array<i64: 1>, scalar_prefetch = 0 : i64, scratch_operands = 0 : i64, tpu.core_type = #tpu.core_type<tc>, window_params = [{transform_indices = @transform_0, window_bounds = array<i64: 16, 1024>}, {pipeline_mode = #tpu.pipeline_mode<synchronous>, transform_indices = @transform_1, window_bounds = array<i64: 1024, 512>}, {pipeline_mode = #tpu.pipeline_mode<synchronous>, transform_indices = @transform_2, window_bounds = array<i64: 1, 512>}, {transform_indices = @transform_3, window_bounds = array<i64: 1, 1>}, {pipeline_mode = #tpu.pipeline_mode<synchronous>, transform_indices = @transform_4, window_bounds = array<i64: 512, 512>}, {pipeline_mode = #tpu.pipeline_mode<synchronous>, transform_indices = @transform_5, window_bounds = array<i64: 1, 512>}, {transform_indices = @transform_6, window_bounds = array<i64: 1, 1>}, {pipeline_mode = #tpu.pipeline_mode<synchronous>, transform_indices = @transform_7, window_bounds = array<i64: 1, 512>}, {transform_indices = @transform_8, window_bounds = array<i64: 1, 1>}, {transform_indices = @transform_9, window_bounds = array<i64: 1, 16>}]} {
    %c0 = arith.constant 0 : index
    %c0_0 = arith.constant 0 : index
    %0 = vector.load %arg1[%c0, %c0_0] : memref<16x1024xbf16, #tpu.memory_space<vmem>>, vector<16x1024xbf16>
    %c0_1 = arith.constant 0 : index
    %c0_2 = arith.constant 0 : index
    %1 = vector.load %arg2[%c0_1, %c0_2] : memref<1024x512xbf16, #tpu.memory_space<vmem>>, vector<1024x512xbf16>
    %cst = arith.constant dense<0.000000e+00> : vector<16x512xf32>
    %2 = tpu.matmul %0, %1, %cst {dimension_numbers = #tpu.dot_dimension_numbers<[1], [0], [0], [1], [0, 0, 1, 1], [], []>} : vector<16x1024xbf16>, vector<1024x512xbf16>, vector<16x512xf32> -> vector<16x512xf32>
    %c0_3 = arith.constant 0 : index
    %c0_4 = arith.constant 0 : index
    %3 = vector.load %arg3[%c0_3, %c0_4] : memref<1x512xf32, #tpu.memory_space<vmem>>, vector<1x512xf32>
    %4 = vector.broadcast %3 : vector<1x512xf32> to vector<16x512xf32>
    %5 = arith.addf %2, %4 : vector<16x512xf32>
    %c0_5 = arith.constant 0 : index
    %c0_6 = arith.constant 0 : index
    %6 = memref.load %arg4[%c0_5, %c0_6] : memref<1x1xf32, #tpu.memory_space<smem>>
    %cst_7 = arith.constant 0.000000e+00 : f32
    %7 = vector.broadcast %cst_7 : f32 to vector<16x512xf32>
    %8 = arith.cmpf ogt, %5, %7 : vector<16x512xf32>
    %9 = vector.broadcast %6 : f32 to vector<16x512xf32>
    %10 = arith.mulf %9, %5 : vector<16x512xf32>
    %11 = arith.select %8, %5, %10 : vector<16x512xi1>, vector<16x512xf32>
    %12 = arith.truncf %11 : vector<16x512xf32> to vector<16x512xbf16>
    %c0_8 = arith.constant 0 : index
    %c0_9 = arith.constant 0 : index
    %13 = vector.load %arg5[%c0_8, %c0_9] : memref<512x512xbf16, #tpu.memory_space<vmem>>, vector<512x512xbf16>
    %cst_10 = arith.constant dense<0.000000e+00> : vector<16x512xf32>
    %14 = tpu.matmul %12, %13, %cst_10 {dimension_numbers = #tpu.dot_dimension_numbers<[1], [0], [0], [1], [0, 0, 1, 1], [], []>} : vector<16x512xbf16>, vector<512x512xbf16>, vector<16x512xf32> -> vector<16x512xf32>
    %c0_11 = arith.constant 0 : index
    %c0_12 = arith.constant 0 : index
    %15 = vector.load %arg6[%c0_11, %c0_12] : memref<1x512xf32, #tpu.memory_space<vmem>>, vector<1x512xf32>
    %16 = vector.broadcast %15 : vector<1x512xf32> to vector<16x512xf32>
    %17 = arith.addf %14, %16 : vector<16x512xf32>
    %c0_13 = arith.constant 0 : index
    %c0_14 = arith.constant 0 : index
    %18 = memref.load %arg7[%c0_13, %c0_14] : memref<1x1xf32, #tpu.memory_space<smem>>
    %cst_15 = arith.constant 0.000000e+00 : f32
    %19 = vector.broadcast %cst_15 : f32 to vector<16x512xf32>
    %20 = arith.cmpf ogt, %17, %19 : vector<16x512xf32>
    %21 = vector.broadcast %18 : f32 to vector<16x512xf32>
    %22 = arith.mulf %21, %17 : vector<16x512xf32>
    %23 = arith.select %20, %17, %22 : vector<16x512xi1>, vector<16x512xf32>
    %c0_16 = arith.constant 0 : index
    %c0_17 = arith.constant 0 : index
    %24 = vector.load %arg8[%c0_16, %c0_17] : memref<1x512xf32, #tpu.memory_space<vmem>>, vector<1x512xf32>
    %cst_18 = arith.constant dense<0.000000e+00> : vector<1x16xf32>
    %25 = tpu.matmul %24, %23, %cst_18 {dimension_numbers = #tpu.dot_dimension_numbers<[1], [1], [0], [0], [0, 0, 1, 0], [], []>} : vector<1x512xf32>, vector<16x512xf32>, vector<1x16xf32> -> vector<1x16xf32>
    %c0_19 = arith.constant 0 : index
    %c0_20 = arith.constant 0 : index
    %26 = memref.load %arg9[%c0_19, %c0_20] : memref<1x1xf32, #tpu.memory_space<smem>>
    %27 = vector.broadcast %26 : f32 to vector<1x16xf32>
    %28 = arith.addf %25, %27 : vector<1x16xf32>
    %c0_21 = arith.constant 0 : index
    %c0_22 = arith.constant 0 : index
    %29 = vector.load %arg10[%c0_21, %c0_22] : memref<1x16xf32, #tpu.memory_space<vmem>>, vector<1x16xf32>
    tpu.vector_store %arg10[%c0_21, %c0_22], %28 {strides = array<i32>} : memref<1x16xf32, #tpu.memory_space<vmem>>, vector<1x16xf32>,
    return
  }
  func.func @transform_0(%arg0: i32) -> (i32, i32) {
    %c0_i32 = arith.constant 0 : i32
    %c0_i32_0 = arith.constant 0 : i32
    return %arg0, %c0_i32 : i32, i32
  }
  func.func @transform_1(%arg0: i32) -> (i32, i32) {
    %c0_i32 = arith.constant 0 : i32
    %c0_i32_0 = arith.constant 0 : i32
    %c0_i32_1 = arith.constant 0 : i32
    return %c0_i32, %c0_i32_0 : i32, i32
  }
  func.func @transform_2(%arg0: i32) -> (i32, i32) {
    %c0_i32 = arith.constant 0 : i32
    %c0_i32_0 = arith.constant 0 : i32
    %c0_i32_1 = arith.constant 0 : i32
    return %c0_i32, %c0_i32_0 : i32, i32
  }
  func.func @transform_3(%arg0: i32) -> (i32, i32) {
    %c0_i32 = arith.constant 0 : i32
    %c0_i32_0 = arith.constant 0 : i32
    %c0_i32_1 = arith.constant 0 : i32
    return %c0_i32, %c0_i32_0 : i32, i32
  }
  func.func @transform_4(%arg0: i32) -> (i32, i32) {
    %c0_i32 = arith.constant 0 : i32
    %c0_i32_0 = arith.constant 0 : i32
    %c0_i32_1 = arith.constant 0 : i32
    return %c0_i32, %c0_i32_0 : i32, i32
  }
  func.func @transform_5(%arg0: i32) -> (i32, i32) {
    %c0_i32 = arith.constant 0 : i32
    %c0_i32_0 = arith.constant 0 : i32
    %c0_i32_1 = arith.constant 0 : i32
    return %c0_i32, %c0_i32_0 : i32, i32
  }
  func.func @transform_6(%arg0: i32) -> (i32, i32) {
    %c0_i32 = arith.constant 0 : i32
    %c0_i32_0 = arith.constant 0 : i32
    %c0_i32_1 = arith.constant 0 : i32
    return %c0_i32, %c0_i32_0 : i32, i32
  }
  func.func @transform_7(%arg0: i32) -> (i32, i32) {
    %c0_i32 = arith.constant 0 : i32
    %c0_i32_0 = arith.constant 0 : i32
    %c0_i32_1 = arith.constant 0 : i32
    return %c0_i32, %c0_i32_0 : i32, i32
  }
  func.func @transform_8(%arg0: i32) -> (i32, i32) {
    %c0_i32 = arith.constant 0 : i32
    %c0_i32_0 = arith.constant 0 : i32
    %c0_i32_1 = arith.constant 0 : i32
    return %c0_i32, %c0_i32_0 : i32, i32
  }
  func.func @transform_9(%arg0: i32) -> (i32, i32) {
    %c0_i32 = arith.constant 0 : i32
    %c0_i32_0 = arith.constant 0 : i32
    return %c0_i32, %arg0 : i32, i32
  }
}

</mosaic_0001>

<llo_original>
// kernel: tpu_custom_call.1
$region0: #{tpu_custom_call.1}
  #allocation0 [shape = 'u32[]', space=smem, size = 0x4, offset = 0x4, fixed_abs, tag = 'smem constant byte address 0x4 - core index']
  #allocation1 [shape = 'u32[144,128]{1,0:T(1,128)}', space=vmem, size = 0x12000, scoped, tag = 'internal scratch']
  #allocation2 [shape = 'f32[1,1]{1,0:T(1,128)S(6)}', space=smem, size = 0x200, scoped, tag = 'scoped memory for tpu_custom_call.1']
  #allocation3 [shape = 'f32[1,1]{1,0:T(1,128)S(6)}', space=smem, size = 0x200, scoped, tag = 'scoped memory for tpu_custom_call.1']
  #allocation4 [shape = 'f32[1,1]{1,0:T(1,128)S(6)}', space=smem, size = 0x200, scoped, tag = 'scoped memory for tpu_custom_call.1']
  %s0 = inlined_call_operand.hbm [shape: bf16[16,1024], index: 0, kind: input, shape index: {}]
  %s1 = inlined_call_operand.hbm [shape: bf16[1024,512], index: 1, kind: input, shape index: {}]
  %s2 = inlined_call_operand.vmem [shape: f32[1,512], index: 2, kind: input, shape index: {}]
  %s3 = inlined_call_operand.<no memory space> [shape: f32[1,1], index: 3, kind: input, shape index: {}]
  %s4 = inlined_call_operand.hbm [shape: bf16[512,512], index: 4, kind: input, shape index: {}]
  %s5 = inlined_call_operand.vmem [shape: f32[1,512], index: 5, kind: input, shape index: {}]
  %s6 = inlined_call_operand.<no memory space> [shape: f32[1,1], index: 6, kind: input, shape index: {}]
  %s7 = inlined_call_operand.vmem [shape: f32[1,512], index: 7, kind: input, shape index: {}]
  %s8 = inlined_call_operand.<no memory space> [shape: f32[1,1], index: 8, kind: input, shape index: {}]
  %s9 = inlined_call_operand.hbm [shape: f32[1,16], index: 9, kind: output, shape index: {}]
  %s10 = sld [smem:[#allocation0]]
  $region58: #{tpu_custom_call.1} parent=0
    _
  %s12 = ssub.s32 1, %s10
  %s13 = scalar_select 0, %s12, %s10
  %14 = sst [smem:[#allocation2]] %s3
  %15 = sst [smem:[#allocation3]] %s6
  %16 = sst [smem:[#allocation4]] %s8
  $region1: #{tpu_custom_call.1} parent=0
    #allocation5 [shape = 'u8[32768]{0}', space=vmem, size = 0x8000, scoped, tag = 'input window, operand 0, single buffered']
    #allocation6 [shape = 's32[1]{0}', space=sflag, size = 0x4, scoped, tag = 'scoped memory for tpu_custom_call.1']
    #allocation7 [shape = 's32[1]{0}', space=sflag, size = 0x4, scoped, tag = 'scoped memory for tpu_custom_call.1']
    #allocation8 [shape = 'u8[1048576]{0}', space=vmem, size = 0x100000, scoped, tag = 'input window, operand 1, single buffered']
    #allocation9 [shape = 's32[1]{0}', space=sflag, size = 0x4, scoped, tag = 'scoped memory for tpu_custom_call.1']
    #allocation10 [shape = 'u8[524288]{0}', space=vmem, size = 0x80000, scoped, tag = 'input window, operand 4, single buffered']
    #allocation11 [shape = 'u8[512]{0}', space=vmem, size = 0x400, scoped, tag = 'output window, operand 0, single buffered']
    %17 = vsyncpa [#allocation6], 0
    %18 = vsyncpa [#allocation9], 0
    %19 = vsyncpa [#allocation7], 0
    // Predicated region
    $region2: #{tpu_custom_call.1} parent=1 // pred_check
      _
    $region3: #{tpu_custom_call.1} parent=1 // pred_check_branch
      %21 = sbr.rel (0) target = $region5
    $region4: #{tpu_custom_call.1} parent=1 // pred_region
      %s23 = ssub.s32 1024, 1024
      %24 = vsyncadd [#allocation6], %s23
      %s25 = sshll.u32 [#allocation5], 4
      %s26 = int_to_ptr.vmem [resolvable:$true] %s25
      %31 = dma.hbm_to_vmem [thread:$0]  %s0, 1024, %s26, [#allocation6], 512, 512, 32
    $region5: #{tpu_custom_call.1} parent=1 // pred_fallthru
      _
    // Predicated region
    $region6: #{tpu_custom_call.1} parent=1 // pred_check
      _
    $region7: #{tpu_custom_call.1} parent=1 // pred_check_branch
      %33 = sbr.rel (0) target = $region9
    $region8: #{tpu_custom_call.1} parent=1 // pred_region
      %s35 = ssub.s32 32768, 32768
      %36 = vsyncadd [#allocation9], %s35
      %s37 = sshll.u32 [#allocation8], 4
      %s38 = int_to_ptr.vmem [resolvable:$true] %s37
      %43 = dma.hbm_to_vmem [thread:$0]  %s1, 32768, %s38, [#allocation9], 256, 256, 16
    $region9: #{tpu_custom_call.1} parent=1 // pred_fallthru
      _
    // Predicated region
    $region10: #{tpu_custom_call.1} parent=1 // pred_check
      _
    $region11: #{tpu_custom_call.1} parent=1 // pred_check_branch
      %45 = sbr.rel (0) target = $region13
    $region12: #{tpu_custom_call.1} parent=1 // pred_region
      _
    $region13: #{tpu_custom_call.1} parent=1 // pred_fallthru
      _
    // Predicated region
    $region14: #{tpu_custom_call.1} parent=1 // pred_check
      _
    $region15: #{tpu_custom_call.1} parent=1 // pred_check_branch
      %47 = sbr.rel (0) target = $region17
    $region16: #{tpu_custom_call.1} parent=1 // pred_region
      _
    $region17: #{tpu_custom_call.1} parent=1 // pred_fallthru
      _
    // Predicated region
    $region18: #{tpu_custom_call.1} parent=1 // pred_check
      _
    $region19: #{tpu_custom_call.1} parent=1 // pred_check_branch
      %49 = sbr.rel (0) target = $region21
    $region20: #{tpu_custom_call.1} parent=1 // pred_region
      %s51 = ssub.s32 16384, 16384
      %52 = vsyncadd [#allocation9], %s51
      %s53 = sshll.u32 [#allocation10], 4
      %s54 = int_to_ptr.vmem [resolvable:$true] %s53
      %59 = dma.hbm_to_vmem [thread:$0]  %s4, 16384, %s54, [#allocation9], 256, 256, 16
    $region21: #{tpu_custom_call.1} parent=1 // pred_fallthru
      _
    // Predicated region
    $region22: #{tpu_custom_call.1} parent=1 // pred_check
      _
    $region23: #{tpu_custom_call.1} parent=1 // pred_check_branch
      %61 = sbr.rel (0) target = $region25
    $region24: #{tpu_custom_call.1} parent=1 // pred_region
      _
    $region25: #{tpu_custom_call.1} parent=1 // pred_fallthru
      _
    // Predicated region
    $region26: #{tpu_custom_call.1} parent=1 // pred_check
      _
    $region27: #{tpu_custom_call.1} parent=1 // pred_check_branch
      %63 = sbr.rel (0) target = $region29
    $region28: #{tpu_custom_call.1} parent=1 // pred_region
      _
    $region29: #{tpu_custom_call.1} parent=1 // pred_fallthru
      _
    // Predicated region
    $region30: #{tpu_custom_call.1} parent=1 // pred_check
      _
    $region31: #{tpu_custom_call.1} parent=1 // pred_check_branch
      %65 = sbr.rel (0) target = $region33
    $region32: #{tpu_custom_call.1} parent=1 // pred_region
      _
    $region33: #{tpu_custom_call.1} parent=1 // pred_fallthru
      _
    // Predicated region
    $region34: #{tpu_custom_call.1} parent=1 // pred_check
      _
    $region35: #{tpu_custom_call.1} parent=1 // pred_check_branch
      %67 = sbr.rel (0) target = $region37
    $region36: #{tpu_custom_call.1} parent=1 // pred_region
      _
    $region37: #{tpu_custom_call.1} parent=1 // pred_fallthru
      _
    // Predicated region
    $region38: #{tpu_custom_call.1} parent=1 // pred_check
      _
    $region39: #{tpu_custom_call.1} parent=1 // pred_check_branch
      %69 = sbr.rel (0) target = $region41
    $region40: #{tpu_custom_call.1} parent=1 // pred_region
      %70 = dma.done [#allocation6], 1024
    $region41: #{tpu_custom_call.1} parent=1 // pred_fallthru
      _
    // Predicated region
    $region42: #{tpu_custom_call.1} parent=1 // pred_check
      _
    $region43: #{tpu_custom_call.1} parent=1 // pred_check_branch
      %72 = sbr.rel (0) target = $region45
    $region44: #{tpu_custom_call.1} parent=1 // pred_region
      %73 = dma.done [#allocation9], 32768
    $region45: #{tpu_custom_call.1} parent=1 // pred_fallthru
      _
    // Predicated region
    $region46: #{tpu_custom_call.1} parent=1 // pred_check
      _
    $region47: #{tpu_custom_call.1} parent=1 // pred_check_branch
      %75 = sbr.rel (0) target = $region49
    $region48: #{tpu_custom_call.1} parent=1 // pred_region
      %76 = dma.done [#allocation9], 16384
    $region49: #{tpu_custom_call.1} parent=1 // pred_fallthru
      _
    %v77 = vld [vmem:[#allocation5] sm:$0xff]
    %v78 = vld [vmem:[#allocation5 + $0x8] sm:$0xff]
    %v79 = vld [vmem:[#allocation5 + $0x10] sm:$0xff]
    %v80 = vld [vmem:[#allocation5 + $0x18] sm:$0xff]
    %v81 = vld [vmem:[#allocation5 + $0x20] sm:$0xff]
    %v82 = vld [vmem:[#allocation5 + $0x28] sm:$0xff]
    %v83 = vld [vmem:[#allocation5 + $0x30] sm:$0xff]
    %v84 = vld [vmem:[#allocation5 + $0x38] sm:$0xff]
    %v85 = vld [vmem:[#allocation8] sm:$0xff]
    %v86 = vld [vmem:[#allocation8 + $0x8] sm:$0xff]
    %v87 = vld [vmem:[#allocation8 + $0x10] sm:$0xff]
    %v88 = vld [vmem:[#allocation8 + $0x18] sm:$0xff]
    %v89 = vld [vmem:[#allocation8 + $0x20] sm:$0xff]
    %v90 = vld [vmem:[#allocation8 + $0x28] sm:$0xff]
    %v91 = vld [vmem:[#allocation8 + $0x30] sm:$0xff]
    %v92 = vld [vmem:[#allocation8 + $0x38] sm:$0xff]
    %v93 = vld [vmem:[#allocation8 + $0x40] sm:$0xff]
    %v94 = vld [vmem:[#allocation8 + $0x48] sm:$0xff]
    %v95 = vld [vmem:[#allocation8 + $0x50] sm:$0xff]
    %v96 = vld [vmem:[#allocation8 + $0x58] sm:$0xff]
    %v97 = vld [vmem:[#allocation8 + $0x60] sm:$0xff]
    %v98 = vld [vmem:[#allocation8 + $0x68] sm:$0xff]
    %v99 = vld [vmem:[#allocation8 + $0x70] sm:$0xff]
    %v100 = vld [vmem:[#allocation8 + $0x78] sm:$0xff]
    %v101 = vld [vmem:[#allocation8 + $0x80] sm:$0xff]
    %v102 = vld [vmem:[#allocation8 + $0x88] sm:$0xff]
    %v103 = vld [vmem:[#allocation8 + $0x90] sm:$0xff]
    %v104 = vld [vmem:[#allocation8 + $0x98] sm:$0xff]
    %v105 = vld [vmem:[#allocation8 + $0xa0] sm:$0xff]
    %v106 = vld [vmem:[#allocation8 + $0xa8] sm:$0xff]
    %v107 = vld [vmem:[#allocation8 + $0xb0] sm:$0xff]
    %v108 = vld [vmem:[#allocation8 + $0xb8] sm:$0xff]
    %v109 = vld [vmem:[#allocation8 + $0xc0] sm:$0xff]
    %v110 = vld [vmem:[#allocation8 + $0xc8] sm:$0xff]
    %v111 = vld [vmem:[#allocation8 + $0xd0] sm:$0xff]
    %v112 = vld [vmem:[#allocation8 + $0xd8] sm:$0xff]
    %v113 = vld [vmem:[#allocation8 + $0xe0] sm:$0xff]
    %v114 = vld [vmem:[#allocation8 + $0xe8] sm:$0xff]
    %v115 = vld [vmem:[#allocation8 + $0xf0] sm:$0xff]
    %v116 = vld [vmem:[#allocation8 + $0xf8] sm:$0xff]
    %v117 = vld [vmem:[#allocation8 + $0x100] sm:$0xff]
    %v118 = vld [vmem:[#allocation8 + $0x108] sm:$0xff]
    %v119 = vld [vmem:[#allocation8 + $0x110] sm:$0xff]
    %v120 = vld [vmem:[#allocation8 + $0x118] sm:$0xff]
    %v121 = vld [vmem:[#allocation8 + $0x120] sm:$0xff]
    %v122 = vld [vmem:[#allocation8 + $0x128] sm:$0xff]
    %v123 = vld [vmem:[#allocation8 + $0x130] sm:$0xff]
    %v124 = vld [vmem:[#allocation8 + $0x138] sm:$0xff]
    %v125 = vld [vmem:[#allocation8 + $0x140] sm:$0xff]
    %v126 = vld [vmem:[#allocation8 + $0x148] sm:$0xff]
    %v127 = vld [vmem:[#allocation8 + $0x150] sm:$0xff]
    %v128 = vld [vmem:[#allocation8 + $0x158] sm:$0xff]
    %v129 = vld [vmem:[#allocation8 + $0x160] sm:$0xff]
    %v130 = vld [vmem:[#allocation8 + $0x168] sm:$0xff]
    %v131 = vld [vmem:[#allocation8 + $0x170] sm:$0xff]
    %v132 = vld [vmem:[#allocation8 + $0x178] sm:$0xff]
    %v133 = vld [vmem:[#allocation8 + $0x180] sm:$0xff]
    %v134 = vld [vmem:[#allocation8 + $0x188] sm:$0xff]
    %v135 = vld [vmem:[#allocation8 + $0x190] sm:$0xff]
    %v136 = vld [vmem:[#allocation8 + $0x198] sm:$0xff]
    %v137 = vld [vmem:[#allocation8 + $0x1a0] sm:$0xff]
    %v138 = vld [vmem:[#allocation8 + $0x1a8] sm:$0xff]
    %v139 = vld [vmem:[#allocation8 + $0x1b0] sm:$0xff]
    %v140 = vld [vmem:[#allocation8 + $0x1b8] sm:$0xff]
    %v141 = vld [vmem:[#allocation8 + $0x1c0] sm:$0xff]
    %v142 = vld [vmem:[#allocation8 + $0x1c8] sm:$0xff]
    %v143 = vld [vmem:[#allocation8 + $0x1d0] sm:$0xff]
    %v144 = vld [vmem:[#allocation8 + $0x1d8] sm:$0xff]
    %v145 = vld [vmem:[#allocation8 + $0x1e0] sm:$0xff]
    %v146 = vld [vmem:[#allocation8 + $0x1e8] sm:$0xff]
    %v147 = vld [vmem:[#allocation8 + $0x1f0] sm:$0xff]
    %v148 = vld [vmem:[#allocation8 + $0x1f8] sm:$0xff]
    %v149 = vld [vmem:[#allocation8 + $0x200] sm:$0xff]
    %v150 = vld [vmem:[#allocation8 + $0x208] sm:$0xff]
    %v151 = vld [vmem:[#allocation8 + $0x210] sm:$0xff]
    %v152 = vld [vmem:[#allocation8 + $0x218] sm:$0xff]
    %v153 = vld [vmem:[#allocation8 + $0x220] sm:$0xff]
    %v154 = vld [vmem:[#allocation8 + $0x228] sm:$0xff]
    %v155 = vld [vmem:[#allocation8 + $0x230] sm:$0xff]
    %v156 = vld [vmem:[#allocation8 + $0x238] sm:$0xff]
    %v157 = vld [vmem:[#allocation8 + $0x240] sm:$0xff]
    %v158 = vld [vmem:[#allocation8 + $0x248] sm:$0xff]
    %v159 = vld [vmem:[#allocation8 + $0x250] sm:$0xff]
    %v160 = vld [vmem:[#allocation8 + $0x258] sm:$0xff]
    %v161 = vld [vmem:[#allocation8 + $0x260] sm:$0xff]
    %v162 = vld [vmem:[#allocation8 + $0x268] sm:$0xff]
    %v163 = vld [vmem:[#allocation8 + $0x270] sm:$0xff]
    %v164 = vld [vmem:[#allocation8 + $0x278] sm:$0xff]
    %v165 = vld [vmem:[#allocation8 + $0x280] sm:$0xff]
    %v166 = vld [vmem:[#allocation8 + $0x288] sm:$0xff]
    %v167 = vld [vmem:[#allocation8 + $0x290] sm:$0xff]
    %v168 = vld [vmem:[#allocation8 + $0x298] sm:$0xff]
    %v169 = vld [vmem:[#allocation8 + $0x2a0] sm:$0xff]
    %v170 = vld [vmem:[#allocation8 + $0x2a8] sm:$0xff]
    %v171 = vld [vmem:[#allocation8 + $0x2b0] sm:$0xff]
    %v172 = vld [vmem:[#allocation8 + $0x2b8] sm:$0xff]
    %v173 = vld [vmem:[#allocation8 + $0x2c0] sm:$0xff]
    %v174 = vld [vmem:[#allocation8 + $0x2c8] sm:$0xff]
    %v175 = vld [vmem:[#allocation8 + $0x2d0] sm:$0xff]
    %v176 = vld [vmem:[#allocation8 + $0x2d8] sm:$0xff]
    %v177 = vld [vmem:[#allocation8 + $0x2e0] sm:$0xff]
    %v178 = vld [vmem:[#allocation8 + $0x2e8] sm:$0xff]
    %v179 = vld [vmem:[#allocation8 + $0x2f0] sm:$0xff]
    %v180 = vld [vmem:[#allocation8 + $0x2f8] sm:$0xff]
    %v181 = vld [vmem:[#allocation8 + $0x300] sm:$0xff]
    %v182 = vld [vmem:[#allocation8 + $0x308] sm:$0xff]
    %v183 = vld [vmem:[#allocation8 + $0x310] sm:$0xff]
    %v184 = vld [vmem:[#allocation8 + $0x318] sm:$0xff]
    %v185 = vld [vmem:[#allocation8 + $0x320] sm:$0xff]
    %v186 = vld [vmem:[#allocation8 + $0x328] sm:$0xff]
    %v187 = vld [vmem:[#allocation8 + $0x330] sm:$0xff]
    %v188 = vld [vmem:[#allocation8 + $0x338] sm:$0xff]
    %v189 = vld [vmem:[#allocation8 + $0x340] sm:$0xff]
    %v190 = vld [vmem:[#allocation8 + $0x348] sm:$0xff]
    %v191 = vld [vmem:[#allocation8 + $0x350] sm:$0xff]
    %v192 = vld [vmem:[#allocation8 + $0x358] sm:$0xff]
    %v193 = vld [vmem:[#allocation8 + $0x360] sm:$0xff]
    %v194 = vld [vmem:[#allocation8 + $0x368] sm:$0xff]
    %v195 = vld [vmem:[#allocation8 + $0x370] sm:$0xff]
    %v196 = vld [vmem:[#allocation8 + $0x378] sm:$0xff]
    %v197 = vld [vmem:[#allocation8 + $0x380] sm:$0xff]
    %v198 = vld [vmem:[#allocation8 + $0x388] sm:$0xff]
    %v199 = vld [vmem:[#allocation8 + $0x390] sm:$0xff]
    %v200 = vld [vmem:[#allocation8 + $0x398] sm:$0xff]
    %v201 = vld [vmem:[#allocation8 + $0x3a0] sm:$0xff]
    %v202 = vld [vmem:[#allocation8 + $0x3a8] sm:$0xff]
    %v203 = vld [vmem:[#allocation8 + $0x3b0] sm:$0xff]
    %v204 = vld [vmem:[#allocation8 + $0x3b8] sm:$0xff]
    %v205 = vld [vmem:[#allocation8 + $0x3c0] sm:$0xff]
    %v206 = vld [vmem:[#allocation8 + $0x3c8] sm:$0xff]
    %v207 = vld [vmem:[#allocation8 + $0x3d0] sm:$0xff]
    %v208 = vld [vmem:[#allocation8 + $0x3d8] sm:$0xff]
    %v209 = vld [vmem:[#allocation8 + $0x3e0] sm:$0xff]
    %v210 = vld [vmem:[#allocation8 + $0x3e8] sm:$0xff]
    %v211 = vld [vmem:[#allocation8 + $0x3f0] sm:$0xff]
    %v212 = vld [vmem:[#allocation8 + $0x3f8] sm:$0xff]
    %v213 = vld [vmem:[#allocation8 + $0x400] sm:$0xff]
    %v214 = vld [vmem:[#allocation8 + $0x408] sm:$0xff]
    %v215 = vld [vmem:[#allocation8 + $0x410] sm:$0xff]
    %v216 = vld [vmem:[#allocation8 + $0x418] sm:$0xff]
    %v217 = vld [vmem:[#allocation8 + $0x420] sm:$0xff]
    %v218 = vld [vmem:[#allocation8 + $0x428] sm:$0xff]
    %v219 = vld [vmem:[#allocation8 + $0x430] sm:$0xff]
    %v220 = vld [vmem:[#allocation8 + $0x438] sm:$0xff]
    %v221 = vld [vmem:[#allocation8 + $0x440] sm:$0xff]
    %v222 = vld [vmem:[#allocation8 + $0x448] sm:$0xff]
    %v223 = vld [vmem:[#allocation8 + $0x450] sm:$0xff]
    %v224 = vld [vmem:[#allocation8 + $0x458] sm:$0xff]
    %v225 = vld [vmem:[#allocation8 + $0x460] sm:$0xff]
    %v226 = vld [vmem:[#allocation8 + $0x468] sm:$0xff]
    %v227 = vld [vmem:[#allocation8 + $0x470] sm:$0xff]
    %v228 = vld [vmem:[#allocation8 + $0x478] sm:$0xff]
    %v229 = vld [vmem:[#allocation8 + $0x480] sm:$0xff]
    %v230 = vld [vmem:[#allocation8 + $0x488] sm:$0xff]
    %v231 = vld [vmem:[#allocation8 + $0x490] sm:$0xff]
    %v232 = vld [vmem:[#allocation8 + $0x498] sm:$0xff]
    %v233 = vld [vmem:[#allocation8 + $0x4a0] sm:$0xff]
    %v234 = vld [vmem:[#allocation8 + $0x4a8] sm:$0xff]
    %v235 = vld [vmem:[#allocation8 + $0x4b0] sm:$0xff]
    %v236 = vld [vmem:[#allocation8 + $0x4b8] sm:$0xff]
    %v237 = vld [vmem:[#allocation8 + $0x4c0] sm:$0xff]
    %v238 = vld [vmem:[#allocation8 + $0x4c8] sm:$0xff]
    %v239 = vld [vmem:[#allocation8 + $0x4d0] sm:$0xff]
    %v240 = vld [vmem:[#allocation8 + $0x4d8] sm:$0xff]
    %v241 = vld [vmem:[#allocation8 + $0x4e0] sm:$0xff]
    %v242 = vld [vmem:[#allocation8 + $0x4e8] sm:$0xff]
    %v243 = vld [vmem:[#allocation8 + $0x4f0] sm:$0xff]
    %v244 = vld [vmem:[#allocation8 + $0x4f8] sm:$0xff]
    %v245 = vld [vmem:[#allocation8 + $0x500] sm:$0xff]
    %v246 = vld [vmem:[#allocation8 + $0x508] sm:$0xff]
    %v247 = vld [vmem:[#allocation8 + $0x510] sm:$0xff]
    %v248 = vld [vmem:[#allocation8 + $0x518] sm:$0xff]
    %v249 = vld [vmem:[#allocation8 + $0x520] sm:$0xff]
    %v250 = vld [vmem:[#allocation8 + $0x528] sm:$0xff]
    %v251 = vld [vmem:[#allocation8 + $0x530] sm:$0xff]
    %v252 = vld [vmem:[#allocation8 + $0x538] sm:$0xff]
    %v253 = vld [vmem:[#allocation8 + $0x540] sm:$0xff]
    %v254 = vld [vmem:[#allocation8 + $0x548] sm:$0xff]
    %v255 = vld [vmem:[#allocation8 + $0x550] sm:$0xff]
    %v256 = vld [vmem:[#allocation8 + $0x558] sm:$0xff]
    %v257 = vld [vmem:[#allocation8 + $0x560] sm:$0xff]
    %v258 = vld [vmem:[#allocation8 + $0x568] sm:$0xff]
    %v259 = vld [vmem:[#allocation8 + $0x570] sm:$0xff]
    %v260 = vld [vmem:[#allocation8 + $0x578] sm:$0xff]
    %v261 = vld [vmem:[#allocation8 + $0x580] sm:$0xff]
    %v262 = vld [vmem:[#allocation8 + $0x588] sm:$0xff]
    %v263 = vld [vmem:[#allocation8 + $0x590] sm:$0xff]
    %v264 = vld [vmem:[#allocation8 + $0x598] sm:$0xff]
    %v265 = vld [vmem:[#allocation8 + $0x5a0] sm:$0xff]
    %v266 = vld [vmem:[#allocation8 + $0x5a8] sm:$0xff]
    %v267 = vld [vmem:[#allocation8 + $0x5b0] sm:$0xff]
    %v268 = vld [vmem:[#allocation8 + $0x5b8] sm:$0xff]
    %v269 = vld [vmem:[#allocation8 + $0x5c0] sm:$0xff]
    %v270 = vld [vmem:[#allocation8 + $0x5c8] sm:$0xff]
    %v271 = vld [vmem:[#allocation8 + $0x5d0] sm:$0xff]
    %v272 = vld [vmem:[#allocation8 + $0x5d8] sm:$0xff]
    %v273 = vld [vmem:[#allocation8 + $0x5e0] sm:$0xff]
    %v274 = vld [vmem:[#allocation8 + $0x5e8] sm:$0xff]
    %v275 = vld [vmem:[#allocation8 + $0x5f0] sm:$0xff]
    %v276 = vld [vmem:[#allocation8 + $0x5f8] sm:$0xff]
    %v277 = vld [vmem:[#allocation8 + $0x600] sm:$0xff]
    %v278 = vld [vmem:[#allocation8 + $0x608] sm:$0xff]
    %v279 = vld [vmem:[#allocation8 + $0x610] sm:$0xff]
    %v280 = vld [vmem:[#allocation8 + $0x618] sm:$0xff]
    %v281 = vld [vmem:[#allocation8 + $0x620] sm:$0xff]
    %v282 = vld [vmem:[#allocation8 + $0x628] sm:$0xff]
    %v283 = vld [vmem:[#allocation8 + $0x630] sm:$0xff]
    %v284 = vld [vmem:[#allocation8 + $0x638] sm:$0xff]
    %v285 = vld [vmem:[#allocation8 + $0x640] sm:$0xff]
    %v286 = vld [vmem:[#allocation8 + $0x648] sm:$0xff]
    %v287 = vld [vmem:[#allocation8 + $0x650] sm:$0xff]
    %v288 = vld [vmem:[#allocation8 + $0x658] sm:$0xff]
    %v289 = vld [vmem:[#allocation8 + $0x660] sm:$0xff]
    %v290 = vld [vmem:[#allocation8 + $0x668] sm:$0xff]
    %v291 = vld [vmem:[#allocation8 + $0x670] sm:$0xff]
    %v292 = vld [vmem:[#allocation8 + $0x678] sm:$0xff]
    %v293 = vld [vmem:[#allocation8 + $0x680] sm:$0xff]
    %v294 = vld [vmem:[#allocation8 + $0x688] sm:$0xff]
    %v295 = vld [vmem:[#allocation8 + $0x690] sm:$0xff]
    %v296 = vld [vmem:[#allocation8 + $0x698] sm:$0xff]
    %v297 = vld [vmem:[#allocation8 + $0x6a0] sm:$0xff]
    %v298 = vld [vmem:[#allocation8 + $0x6a8] sm:$0xff]
    %v299 = vld [vmem:[#allocation8 + $0x6b0] sm:$0xff]
    %v300 = vld [vmem:[#allocation8 + $0x6b8] sm:$0xff]
    %v301 = vld [vmem:[#allocation8 + $0x6c0] sm:$0xff]
    %v302 = vld [vmem:[#allocation8 + $0x6c8] sm:$0xff]
    %v303 = vld [vmem:[#allocation8 + $0x6d0] sm:$0xff]
    %v304 = vld [vmem:[#allocation8 + $0x6d8] sm:$0xff]
    %v305 = vld [vmem:[#allocation8 + $0x6e0] sm:$0xff]
    %v306 = vld [vmem:[#allocation8 + $0x6e8] sm:$0xff]
    %v307 = vld [vmem:[#allocation8 + $0x6f0] sm:$0xff]
    %v308 = vld [vmem:[#allocation8 + $0x6f8] sm:$0xff]
    %v309 = vld [vmem:[#allocation8 + $0x700] sm:$0xff]
    %v310 = vld [vmem:[#allocation8 + $0x708] sm:$0xff]
    %v311 = vld [vmem:[#allocation8 + $0x710] sm:$0xff]
    %v312 = vld [vmem:[#allocation8 + $0x718] sm:$0xff]
    %v313 = vld [vmem:[#allocation8 + $0x720] sm:$0xff]
    %v314 = vld [vmem:[#allocation8 + $0x728] sm:$0xff]
    %v315 = vld [vmem:[#allocation8 + $0x730] sm:$0xff]
    %v316 = vld [vmem:[#allocation8 + $0x738] sm:$0xff]
    %v317 = vld [vmem:[#allocation8 + $0x740] sm:$0xff]
    %v318 = vld [vmem:[#allocation8 + $0x748] sm:$0xff]
    %v319 = vld [vmem:[#allocation8 + $0x750] sm:$0xff]
    %v320 = vld [vmem:[#allocation8 + $0x758] sm:$0xff]
    %v321 = vld [vmem:[#allocation8 + $0x760] sm:$0xff]
    %v322 = vld [vmem:[#allocation8 + $0x768] sm:$0xff]
    %v323 = vld [vmem:[#allocation8 + $0x770] sm:$0xff]
    %v324 = vld [vmem:[#allocation8 + $0x778] sm:$0xff]
    %v325 = vld [vmem:[#allocation8 + $0x780] sm:$0xff]
    %v326 = vld [vmem:[#allocation8 + $0x788] sm:$0xff]
    %v327 = vld [vmem:[#allocation8 + $0x790] sm:$0xff]
    %v328 = vld [vmem:[#allocation8 + $0x798] sm:$0xff]
    %v329 = vld [vmem:[#allocation8 + $0x7a0] sm:$0xff]
    %v330 = vld [vmem:[#allocation8 + $0x7a8] sm:$0xff]
    %v331 = vld [vmem:[#allocation8 + $0x7b0] sm:$0xff]
    %v332 = vld [vmem:[#allocation8 + $0x7b8] sm:$0xff]
    %v333 = vld [vmem:[#allocation8 + $0x7c0] sm:$0xff]
    %v334 = vld [vmem:[#allocation8 + $0x7c8] sm:$0xff]
    %v335 = vld [vmem:[#allocation8 + $0x7d0] sm:$0xff]
    %v336 = vld [vmem:[#allocation8 + $0x7d8] sm:$0xff]
    %v337 = vld [vmem:[#allocation8 + $0x7e0] sm:$0xff]
    %v338 = vld [vmem:[#allocation8 + $0x7e8] sm:$0xff]
    %v339 = vld [vmem:[#allocation8 + $0x7f0] sm:$0xff]
    %v340 = vld [vmem:[#allocation8 + $0x7f8] sm:$0xff]
    %v341 = vld [vmem:[%s2] sm:$0xf]
    %v343 = vlaneseq
    %v344 = vshrl.u32 %v343, 7
    %v345 = vsub.s32 0, %v344
    %v346 = vrot.slane %v341, %v345
    %v347 = vlaneseq
    %v348 = vshrl.u32 %v347, 7
    %v349 = vsub.s32 1, %v348
    %v350 = vrot.slane %v341, %v349
    %v351 = vlaneseq
    %v352 = vshrl.u32 %v351, 7
    %v353 = vsub.s32 2, %v352
    %v354 = vrot.slane %v341, %v353
    %v355 = vlaneseq
    %v356 = vshrl.u32 %v355, 7
    %v357 = vsub.s32 3, %v356
    %v358 = vrot.slane %v341, %v357
    %v371 = vunpack.c.l.b16 %v77
    %v372 = vunpack.c.h.b16 %v77
    %v373 = vunpack.c.l.b16 %v78
    %v374 = vunpack.c.h.b16 %v78
    %v375 = vunpack.c.l.b16 %v79
    %v376 = vunpack.c.h.b16 %v79
    %v377 = vunpack.c.l.b16 %v80
    %v378 = vunpack.c.h.b16 %v80
    %v379 = vunpack.c.l.b16 %v81
    %v380 = vunpack.c.h.b16 %v81
    %v381 = vunpack.c.l.b16 %v82
    %v382 = vunpack.c.h.b16 %v82
    %v383 = vunpack.c.l.b16 %v83
    %v384 = vunpack.c.h.b16 %v83
    %v385 = vunpack.c.l.b16 %v84
    %v386 = vunpack.c.h.b16 %v84
    %v387 = vpack.c.b16 %v379, %v371
    %v388 = vpack.c.b16 %v380, %v372
    %v389 = vpack.c.b16 %v381, %v373
    %v390 = vpack.c.b16 %v382, %v374
    %v391 = vpack.c.b16 %v383, %v375
    %v392 = vpack.c.b16 %v384, %v376
    %v393 = vpack.c.b16 %v385, %v377
    %v394 = vpack.c.b16 %v386, %v378
    %v659 = vunpack.c.l.b16 %v85
    %v660 = vunpack.c.h.b16 %v85
    %v661 = vunpack.c.l.b16 %v86
    %v662 = vunpack.c.h.b16 %v86
    %v663 = vunpack.c.l.b16 %v87
    %v664 = vunpack.c.h.b16 %v87
    %v665 = vunpack.c.l.b16 %v88
    %v666 = vunpack.c.h.b16 %v88
    %v667 = vunpack.c.l.b16 %v89
    %v668 = vunpack.c.h.b16 %v89
    %v669 = vunpack.c.l.b16 %v90
    %v670 = vunpack.c.h.b16 %v90
    %v671 = vunpack.c.l.b16 %v91
    %v672 = vunpack.c.h.b16 %v91
    %v673 = vunpack.c.l.b16 %v92
    %v674 = vunpack.c.h.b16 %v92
    %v675 = vunpack.c.l.b16 %v93
    %v676 = vunpack.c.h.b16 %v93
    %v677 = vunpack.c.l.b16 %v94
    %v678 = vunpack.c.h.b16 %v94
    %v679 = vunpack.c.l.b16 %v95
    %v680 = vunpack.c.h.b16 %v95
    %v681 = vunpack.c.l.b16 %v96
    %v682 = vunpack.c.h.b16 %v96
    %v683 = vunpack.c.l.b16 %v97
    %v684 = vunpack.c.h.b16 %v97
    %v685 = vunpack.c.l.b16 %v98
    %v686 = vunpack.c.h.b16 %v98
    %v687 = vunpack.c.l.b16 %v99
    %v688 = vunpack.c.h.b16 %v99
    %v689 = vunpack.c.l.b16 %v100
    %v690 = vunpack.c.h.b16 %v100
    %v691 = vunpack.c.l.b16 %v101
    %v692 = vunpack.c.h.b16 %v101
    %v693 = vunpack.c.l.b16 %v102
    %v694 = vunpack.c.h.b16 %v102
    %v695 = vunpack.c.l.b16 %v103
    %v696 = vunpack.c.h.b16 %v103
    %v697 = vunpack.c.l.b16 %v104
    %v698 = vunpack.c.h.b16 %v104
    %v699 = vunpack.c.l.b16 %v105
    %v700 = vunpack.c.h.b16 %v105
    %v701 = vunpack.c.l.b16 %v106
    %v702 = vunpack.c.h.b16 %v106
    %v703 = vunpack.c.l.b16 %v107
    %v704 = vunpack.c.h.b16 %v107
    %v705 = vunpack.c.l.b16 %v108
    %v706 = vunpack.c.h.b16 %v108
    %v707 = vunpack.c.l.b16 %v109
    %v708 = vunpack.c.h.b16 %v109
    %v709 = vunpack.c.l.b16 %v110
    %v710 = vunpack.c.h.b16 %v110
    %v711 = vunpack.c.l.b16 %v111
    %v712 = vunpack.c.h.b16 %v111
    %v713 = vunpack.c.l.b16 %v112
    %v714 = vunpack.c.h.b16 %v112
    %v715 = vunpack.c.l.b16 %v113
    %v716 = vunpack.c.h.b16 %v113
    %v717 = vunpack.c.l.b16 %v114
    %v718 = vunpack.c.h.b16 %v114
    %v719 = vunpack.c.l.b16 %v115
    %v720 = vunpack.c.h.b16 %v115
    %v721 = vunpack.c.l.b16 %v116
    %v722 = vunpack.c.h.b16 %v116
    %v723 = vunpack.c.l.b16 %v117
    %v724 = vunpack.c.h.b16 %v117
    %v725 = vunpack.c.l.b16 %v118
    %v726 = vunpack.c.h.b16 %v118
    %v727 = vunpack.c.l.b16 %v119
    %v728 = vunpack.c.h.b16 %v119
    %v729 = vunpack.c.l.b16 %v120
    %v730 = vunpack.c.h.b16 %v120
    %v731 = vunpack.c.l.b16 %v121
    %v732 = vunpack.c.h.b16 %v121
    %v733 = vunpack.c.l.b16 %v122
    %v734 = vunpack.c.h.b16 %v122
    %v735 = vunpack.c.l.b16 %v123
    %v736 = vunpack.c.h.b16 %v123
    %v737 = vunpack.c.l.b16 %v124
    %v738 = vunpack.c.h.b16 %v124
    %v739 = vunpack.c.l.b16 %v125
    %v740 = vunpack.c.h.b16 %v125
    %v741 = vunpack.c.l.b16 %v126
    %v742 = vunpack.c.h.b16 %v126
    %v743 = vunpack.c.l.b16 %v127
    %v744 = vunpack.c.h.b16 %v127
    %v745 = vunpack.c.l.b16 %v128
    %v746 = vunpack.c.h.b16 %v128
    %v747 = vunpack.c.l.b16 %v129
    %v748 = vunpack.c.h.b16 %v129
    %v749 = vunpack.c.l.b16 %v130
    %v750 = vunpack.c.h.b16 %v130
    %v751 = vunpack.c.l.b16 %v131
    %v752 = vunpack.c.h.b16 %v131
    %v753 = vunpack.c.l.b16 %v132
    %v754 = vunpack.c.h.b16 %v132
    %v755 = vunpack.c.l.b16 %v133
    %v756 = vunpack.c.h.b16 %v133
    %v757 = vunpack.c.l.b16 %v134
    %v758 = vunpack.c.h.b16 %v134
    %v759 = vunpack.c.l.b16 %v135
    %v760 = vunpack.c.h.b16 %v135
    %v761 = vunpack.c.l.b16 %v136
    %v762 = vunpack.c.h.b16 %v136
    %v763 = vunpack.c.l.b16 %v137
    %v764 = vunpack.c.h.b16 %v137
    %v765 = vunpack.c.l.b16 %v138
    %v766 = vunpack.c.h.b16 %v138
    %v767 = vunpack.c.l.b16 %v139
    %v768 = vunpack.c.h.b16 %v139
    %v769 = vunpack.c.l.b16 %v140
    %v770 = vunpack.c.h.b16 %v140
    %v771 = vunpack.c.l.b16 %v141
    %v772 = vunpack.c.h.b16 %v141
    %v773 = vunpack.c.l.b16 %v142
    %v774 = vunpack.c.h.b16 %v142
    %v775 = vunpack.c.l.b16 %v143
    %v776 = vunpack.c.h.b16 %v143
    %v777 = vunpack.c.l.b16 %v144
    %v778 = vunpack.c.h.b16 %v144
    %v779 = vunpack.c.l.b16 %v145
    %v780 = vunpack.c.h.b16 %v145
    %v781 = vunpack.c.l.b16 %v146
    %v782 = vunpack.c.h.b16 %v146
    %v783 = vunpack.c.l.b16 %v147
    %v784 = vunpack.c.h.b16 %v147
    %v785 = vunpack.c.l.b16 %v148
    %v786 = vunpack.c.h.b16 %v148
    %v787 = vunpack.c.l.b16 %v149
    %v788 = vunpack.c.h.b16 %v149
    %v789 = vunpack.c.l.b16 %v150
    %v790 = vunpack.c.h.b16 %v150
    %v791 = vunpack.c.l.b16 %v151
    %v792 = vunpack.c.h.b16 %v151
    %v793 = vunpack.c.l.b16 %v152
    %v794 = vunpack.c.h.b16 %v152
    %v795 = vunpack.c.l.b16 %v153
    %v796 = vunpack.c.h.b16 %v153
    %v797 = vunpack.c.l.b16 %v154
    %v798 = vunpack.c.h.b16 %v154
    %v799 = vunpack.c.l.b16 %v155
    %v800 = vunpack.c.h.b16 %v155
    %v801 = vunpack.c.l.b16 %v156
    %v802 = vunpack.c.h.b16 %v156
    %v803 = vunpack.c.l.b16 %v157
    %v804 = vunpack.c.h.b16 %v157
    %v805 = vunpack.c.l.b16 %v158
    %v806 = vunpack.c.h.b16 %v158
    %v807 = vunpack.c.l.b16 %v159
    %v808 = vunpack.c.h.b16 %v159
    %v809 = vunpack.c.l.b16 %v160
    %v810 = vunpack.c.h.b16 %v160
    %v811 = vunpack.c.l.b16 %v161
    %v812 = vunpack.c.h.b16 %v161
    %v813 = vunpack.c.l.b16 %v162
    %v814 = vunpack.c.h.b16 %v162
    %v815 = vunpack.c.l.b16 %v163
    %v816 = vunpack.c.h.b16 %v163
    %v817 = vunpack.c.l.b16 %v164
    %v818 = vunpack.c.h.b16 %v164
    %v819 = vunpack.c.l.b16 %v165
    %v820 = vunpack.c.h.b16 %v165
    %v821 = vunpack.c.l.b16 %v166
    %v822 = vunpack.c.h.b16 %v166
    %v823 = vunpack.c.l.b16 %v167
    %v824 = vunpack.c.h.b16 %v167
    %v825 = vunpack.c.l.b16 %v168
    %v826 = vunpack.c.h.b16 %v168
    %v827 = vunpack.c.l.b16 %v169
    %v828 = vunpack.c.h.b16 %v169
    %v829 = vunpack.c.l.b16 %v170
    %v830 = vunpack.c.h.b16 %v170
    %v831 = vunpack.c.l.b16 %v171
    %v832 = vunpack.c.h.b16 %v171
    %v833 = vunpack.c.l.b16 %v172
    %v834 = vunpack.c.h.b16 %v172
    %v835 = vunpack.c.l.b16 %v173
    %v836 = vunpack.c.h.b16 %v173
    %v837 = vunpack.c.l.b16 %v174
    %v838 = vunpack.c.h.b16 %v174
    %v839 = vunpack.c.l.b16 %v175
    %v840 = vunpack.c.h.b16 %v175
    %v841 = vunpack.c.l.b16 %v176
    %v842 = vunpack.c.h.b16 %v176
    %v843 = vunpack.c.l.b16 %v177
    %v844 = vunpack.c.h.b16 %v177
    %v845 = vunpack.c.l.b16 %v178
    %v846 = vunpack.c.h.b16 %v178
    %v847 = vunpack.c.l.b16 %v179
    %v848 = vunpack.c.h.b16 %v179
    %v849 = vunpack.c.l.b16 %v180
    %v850 = vunpack.c.h.b16 %v180
    %v851 = vunpack.c.l.b16 %v181
    %v852 = vunpack.c.h.b16 %v181
    %v853 = vunpack.c.l.b16 %v182
    %v854 = vunpack.c.h.b16 %v182
    %v855 = vunpack.c.l.b16 %v183
    %v856 = vunpack.c.h.b16 %v183
    %v857 = vunpack.c.l.b16 %v184
    %v858 = vunpack.c.h.b16 %v184
    %v859 = vunpack.c.l.b16 %v185
    %v860 = vunpack.c.h.b16 %v185
    %v861 = vunpack.c.l.b16 %v186
    %v862 = vunpack.c.h.b16 %v186
    %v863 = vunpack.c.l.b16 %v187
    %v864 = vunpack.c.h.b16 %v187
    %v865 = vunpack.c.l.b16 %v188
    %v866 = vunpack.c.h.b16 %v188
    %v867 = vunpack.c.l.b16 %v189
    %v868 = vunpack.c.h.b16 %v189
    %v869 = vunpack.c.l.b16 %v190
    %v870 = vunpack.c.h.b16 %v190
    %v871 = vunpack.c.l.b16 %v191
    %v872 = vunpack.c.h.b16 %v191
    %v873 = vunpack.c.l.b16 %v192
    %v874 = vunpack.c.h.b16 %v192
    %v875 = vunpack.c.l.b16 %v193
    %v876 = vunpack.c.h.b16 %v193
    %v877 = vunpack.c.l.b16 %v194
    %v878 = vunpack.c.h.b16 %v194
    %v879 = vunpack.c.l.b16 %v195
    %v880 = vunpack.c.h.b16 %v195
    %v881 = vunpack.c.l.b16 %v196
    %v882 = vunpack.c.h.b16 %v196
    %v883 = vunpack.c.l.b16 %v197
    %v884 = vunpack.c.h.b16 %v197
    %v885 = vunpack.c.l.b16 %v198
    %v886 = vunpack.c.h.b16 %v198
    %v887 = vunpack.c.l.b16 %v199
    %v888 = vunpack.c.h.b16 %v199
    %v889 = vunpack.c.l.b16 %v200
    %v890 = vunpack.c.h.b16 %v200
    %v891 = vunpack.c.l.b16 %v201
    %v892 = vunpack.c.h.b16 %v201
    %v893 = vunpack.c.l.b16 %v202
    %v894 = vunpack.c.h.b16 %v202
    %v895 = vunpack.c.l.b16 %v203
    %v896 = vunpack.c.h.b16 %v203
    %v897 = vunpack.c.l.b16 %v204
    %v898 = vunpack.c.h.b16 %v204
    %v899 = vunpack.c.l.b16 %v205
    %v900 = vunpack.c.h.b16 %v205
    %v901 = vunpack.c.l.b16 %v206
    %v902 = vunpack.c.h.b16 %v206
    %v903 = vunpack.c.l.b16 %v207
    %v904 = vunpack.c.h.b16 %v207
    %v905 = vunpack.c.l.b16 %v208
    %v906 = vunpack.c.h.b16 %v208
    %v907 = vunpack.c.l.b16 %v209
    %v908 = vunpack.c.h.b16 %v209
    %v909 = vunpack.c.l.b16 %v210
    %v910 = vunpack.c.h.b16 %v210
    %v911 = vunpack.c.l.b16 %v211
    %v912 = vunpack.c.h.b16 %v211
    %v913 = vunpack.c.l.b16 %v212
    %v914 = vunpack.c.h.b16 %v212
    %v915 = vunpack.c.l.b16 %v213
    %v916 = vunpack.c.h.b16 %v213
    %v917 = vunpack.c.l.b16 %v214
    %v918 = vunpack.c.h.b16 %v214
    %v919 = vunpack.c.l.b16 %v215
    %v920 = vunpack.c.h.b16 %v215
    %v921 = vunpack.c.l.b16 %v216
    %v922 = vunpack.c.h.b16 %v216
    %v923 = vunpack.c.l.b16 %v217
    %v924 = vunpack.c.h.b16 %v217
    %v925 = vunpack.c.l.b16 %v218
    %v926 = vunpack.c.h.b16 %v218
    %v927 = vunpack.c.l.b16 %v219
    %v928 = vunpack.c.h.b16 %v219
    %v929 = vunpack.c.l.b16 %v220
    %v930 = vunpack.c.h.b16 %v220
    %v931 = vunpack.c.l.b16 %v221
    %v932 = vunpack.c.h.b16 %v221
    %v933 = vunpack.c.l.b16 %v222
    %v934 = vunpack.c.h.b16 %v222
    %v935 = vunpack.c.l.b16 %v223
    %v936 = vunpack.c.h.b16 %v223
    %v937 = vunpack.c.l.b16 %v224
    %v938 = vunpack.c.h.b16 %v224
    %v939 = vunpack.c.l.b16 %v225
    %v940 = vunpack.c.h.b16 %v225
    %v941 = vunpack.c.l.b16 %v226
    %v942 = vunpack.c.h.b16 %v226
    %v943 = vunpack.c.l.b16 %v227
    %v944 = vunpack.c.h.b16 %v227
    %v945 = vunpack.c.l.b16 %v228
    %v946 = vunpack.c.h.b16 %v228
    %v947 = vunpack.c.l.b16 %v229
    %v948 = vunpack.c.h.b16 %v229
    %v949 = vunpack.c.l.b16 %v230
    %v950 = vunpack.c.h.b16 %v230
    %v951 = vunpack.c.l.b16 %v231
    %v952 = vunpack.c.h.b16 %v231
    %v953 = vunpack.c.l.b16 %v232
    %v954 = vunpack.c.h.b16 %v232
    %v955 = vunpack.c.l.b16 %v233
    %v956 = vunpack.c.h.b16 %v233
    %v957 = vunpack.c.l.b16 %v234
    %v958 = vunpack.c.h.b16 %v234
    %v959 = vunpack.c.l.b16 %v235
    %v960 = vunpack.c.h.b16 %v235
    %v961 = vunpack.c.l.b16 %v236
    %v962 = vunpack.c.h.b16 %v236
    %v963 = vunpack.c.l.b16 %v237
    %v964 = vunpack.c.h.b16 %v237
    %v965 = vunpack.c.l.b16 %v238
    %v966 = vunpack.c.h.b16 %v238
    %v967 = vunpack.c.l.b16 %v239
    %v968 = vunpack.c.h.b16 %v239
    %v969 = vunpack.c.l.b16 %v240
    %v970 = vunpack.c.h.b16 %v240
    %v971 = vunpack.c.l.b16 %v241
    %v972 = vunpack.c.h.b16 %v241
    %v973 = vunpack.c.l.b16 %v242
    %v974 = vunpack.c.h.b16 %v242
    %v975 = vunpack.c.l.b16 %v243
    %v976 = vunpack.c.h.b16 %v243
    %v977 = vunpack.c.l.b16 %v244
    %v978 = vunpack.c.h.b16 %v244
    %v979 = vunpack.c.l.b16 %v245
    %v980 = vunpack.c.h.b16 %v245
    %v981 = vunpack.c.l.b16 %v246
    %v982 = vunpack.c.h.b16 %v246
    %v983 = vunpack.c.l.b16 %v247
    %v984 = vunpack.c.h.b16 %v247
    %v985 = vunpack.c.l.b16 %v248
    %v986 = vunpack.c.h.b16 %v248
    %v987 = vunpack.c.l.b16 %v249
    %v988 = vunpack.c.h.b16 %v249
    %v989 = vunpack.c.l.b16 %v250
    %v990 = vunpack.c.h.b16 %v250
    %v991 = vunpack.c.l.b16 %v251
    %v992 = vunpack.c.h.b16 %v251
    %v993 = vunpack.c.l.b16 %v252
    %v994 = vunpack.c.h.b16 %v252
    %v995 = vunpack.c.l.b16 %v253
    %v996 = vunpack.c.h.b16 %v253
    %v997 = vunpack.c.l.b16 %v254
    %v998 = vunpack.c.h.b16 %v254
    %v999 = vunpack.c.l.b16 %v255
    %v1000 = vunpack.c.h.b16 %v255
    %v1001 = vunpack.c.l.b16 %v256
    %v1002 = vunpack.c.h.b16 %v256
    %v1003 = vunpack.c.l.b16 %v257
    %v1004 = vunpack.c.h.b16 %v257
    %v1005 = vunpack.c.l.b16 %v258
    %v1006 = vunpack.c.h.b16 %v258
    %v1007 = vunpack.c.l.b16 %v259
    %v1008 = vunpack.c.h.b16 %v259
    %v1009 = vunpack.c.l.b16 %v260
    %v1010 = vunpack.c.h.b16 %v260
    %v1011 = vunpack.c.l.b16 %v261
    %v1012 = vunpack.c.h.b16 %v261
    %v1013 = vunpack.c.l.b16 %v262
    %v1014 = vunpack.c.h.b16 %v262
    %v1015 = vunpack.c.l.b16 %v263
    %v1016 = vunpack.c.h.b16 %v263
    %v1017 = vunpack.c.l.b16 %v264
    %v1018 = vunpack.c.h.b16 %v264
    %v1019 = vunpack.c.l.b16 %v265
    %v1020 = vunpack.c.h.b16 %v265
    %v1021 = vunpack.c.l.b16 %v266
    %v1022 = vunpack.c.h.b16 %v266
    %v1023 = vunpack.c.l.b16 %v267
    %v1024 = vunpack.c.h.b16 %v267
    %v1025 = vunpack.c.l.b16 %v268
    %v1026 = vunpack.c.h.b16 %v268
    %v1027 = vunpack.c.l.b16 %v269
    %v1028 = vunpack.c.h.b16 %v269
    %v1029 = vunpack.c.l.b16 %v270
    %v1030 = vunpack.c.h.b16 %v270
    %v1031 = vunpack.c.l.b16 %v271
    %v1032 = vunpack.c.h.b16 %v271
    %v1033 = vunpack.c.l.b16 %v272
    %v1034 = vunpack.c.h.b16 %v272
    %v1035 = vunpack.c.l.b16 %v273
    %v1036 = vunpack.c.h.b16 %v273
    %v1037 = vunpack.c.l.b16 %v274
    %v1038 = vunpack.c.h.b16 %v274
    %v1039 = vunpack.c.l.b16 %v275
    %v1040 = vunpack.c.h.b16 %v275
    %v1041 = vunpack.c.l.b16 %v276
    %v1042 = vunpack.c.h.b16 %v276
    %v1043 = vunpack.c.l.b16 %v277
    %v1044 = vunpack.c.h.b16 %v277
    %v1045 = vunpack.c.l.b16 %v278
    %v1046 = vunpack.c.h.b16 %v278
    %v1047 = vunpack.c.l.b16 %v279
    %v1048 = vunpack.c.h.b16 %v279
    %v1049 = vunpack.c.l.b16 %v280
    %v1050 = vunpack.c.h.b16 %v280
    %v1051 = vunpack.c.l.b16 %v281
    %v1052 = vunpack.c.h.b16 %v281
    %v1053 = vunpack.c.l.b16 %v282
    %v1054 = vunpack.c.h.b16 %v282
    %v1055 = vunpack.c.l.b16 %v283
    %v1056 = vunpack.c.h.b16 %v283
    %v1057 = vunpack.c.l.b16 %v284
    %v1058 = vunpack.c.h.b16 %v284
    %v1059 = vunpack.c.l.b16 %v285
    %v1060 = vunpack.c.h.b16 %v285
    %v1061 = vunpack.c.l.b16 %v286
    %v1062 = vunpack.c.h.b16 %v286
    %v1063 = vunpack.c.l.b16 %v287
    %v1064 = vunpack.c.h.b16 %v287
    %v1065 = vunpack.c.l.b16 %v288
    %v1066 = vunpack.c.h.b16 %v288
    %v1067 = vunpack.c.l.b16 %v289
    %v1068 = vunpack.c.h.b16 %v289
    %v1069 = vunpack.c.l.b16 %v290
    %v1070 = vunpack.c.h.b16 %v290
    %v1071 = vunpack.c.l.b16 %v291
    %v1072 = vunpack.c.h.b16 %v291
    %v1073 = vunpack.c.l.b16 %v292
    %v1074 = vunpack.c.h.b16 %v292
    %v1075 = vunpack.c.l.b16 %v293
    %v1076 = vunpack.c.h.b16 %v293
    %v1077 = vunpack.c.l.b16 %v294
    %v1078 = vunpack.c.h.b16 %v294
    %v1079 = vunpack.c.l.b16 %v295
    %v1080 = vunpack.c.h.b16 %v295
    %v1081 = vunpack.c.l.b16 %v296
    %v1082 = vunpack.c.h.b16 %v296
    %v1083 = vunpack.c.l.b16 %v297
    %v1084 = vunpack.c.h.b16 %v297
    %v1085 = vunpack.c.l.b16 %v298
    %v1086 = vunpack.c.h.b16 %v298
    %v1087 = vunpack.c.l.b16 %v299
    %v1088 = vunpack.c.h.b16 %v299
    %v1089 = vunpack.c.l.b16 %v300
    %v1090 = vunpack.c.h.b16 %v300
    %v1091 = vunpack.c.l.b16 %v301
    %v1092 = vunpack.c.h.b16 %v301
    %v1093 = vunpack.c.l.b16 %v302
    %v1094 = vunpack.c.h.b16 %v302
    %v1095 = vunpack.c.l.b16 %v303
    %v1096 = vunpack.c.h.b16 %v303
    %v1097 = vunpack.c.l.b16 %v304
    %v1098 = vunpack.c.h.b16 %v304
    %v1099 = vunpack.c.l.b16 %v305
    %v1100 = vunpack.c.h.b16 %v305
    %v1101 = vunpack.c.l.b16 %v306
    %v1102 = vunpack.c.h.b16 %v306
    %v1103 = vunpack.c.l.b16 %v307
    %v1104 = vunpack.c.h.b16 %v307
    %v1105 = vunpack.c.l.b16 %v308
    %v1106 = vunpack.c.h.b16 %v308
    %v1107 = vunpack.c.l.b16 %v309
    %v1108 = vunpack.c.h.b16 %v309
    %v1109 = vunpack.c.l.b16 %v310
    %v1110 = vunpack.c.h.b16 %v310
    %v1111 = vunpack.c.l.b16 %v311
    %v1112 = vunpack.c.h.b16 %v311
    %v1113 = vunpack.c.l.b16 %v312
    %v1114 = vunpack.c.h.b16 %v312
    %v1115 = vunpack.c.l.b16 %v313
    %v1116 = vunpack.c.h.b16 %v313
    %v1117 = vunpack.c.l.b16 %v314
    %v1118 = vunpack.c.h.b16 %v314
    %v1119 = vunpack.c.l.b16 %v315
    %v1120 = vunpack.c.h.b16 %v315
    %v1121 = vunpack.c.l.b16 %v316
    %v1122 = vunpack.c.h.b16 %v316
    %v1123 = vunpack.c.l.b16 %v317
    %v1124 = vunpack.c.h.b16 %v317
    %v1125 = vunpack.c.l.b16 %v318
    %v1126 = vunpack.c.h.b16 %v318
    %v1127 = vunpack.c.l.b16 %v319
    %v1128 = vunpack.c.h.b16 %v319
    %v1129 = vunpack.c.l.b16 %v320
    %v1130 = vunpack.c.h.b16 %v320
    %v1131 = vunpack.c.l.b16 %v321
    %v1132 = vunpack.c.h.b16 %v321
    %v1133 = vunpack.c.l.b16 %v322
    %v1134 = vunpack.c.h.b16 %v322
    %v1135 = vunpack.c.l.b16 %v323
    %v1136 = vunpack.c.h.b16 %v323
    %v1137 = vunpack.c.l.b16 %v324
    %v1138 = vunpack.c.h.b16 %v324
    %v1139 = vunpack.c.l.b16 %v325
    %v1140 = vunpack.c.h.b16 %v325
    %v1141 = vunpack.c.l.b16 %v326
    %v1142 = vunpack.c.h.b16 %v326
    %v1143 = vunpack.c.l.b16 %v327
    %v1144 = vunpack.c.h.b16 %v327
    %v1145 = vunpack.c.l.b16 %v328
    %v1146 = vunpack.c.h.b16 %v328
    %v1147 = vunpack.c.l.b16 %v329
    %v1148 = vunpack.c.h.b16 %v329
    %v1149 = vunpack.c.l.b16 %v330
    %v1150 = vunpack.c.h.b16 %v330
    %v1151 = vunpack.c.l.b16 %v331
    %v1152 = vunpack.c.h.b16 %v331
    %v1153 = vunpack.c.l.b16 %v332
    %v1154 = vunpack.c.h.b16 %v332
    %v1155 = vunpack.c.l.b16 %v333
    %v1156 = vunpack.c.h.b16 %v333
    %v1157 = vunpack.c.l.b16 %v334
    %v1158 = vunpack.c.h.b16 %v334
    %v1159 = vunpack.c.l.b16 %v335
    %v1160 = vunpack.c.h.b16 %v335
    %v1161 = vunpack.c.l.b16 %v336
    %v1162 = vunpack.c.h.b16 %v336
    %v1163 = vunpack.c.l.b16 %v337
    %v1164 = vunpack.c.h.b16 %v337
    %v1165 = vunpack.c.l.b16 %v338
    %v1166 = vunpack.c.h.b16 %v338
    %v1167 = vunpack.c.l.b16 %v339
    %v1168 = vunpack.c.h.b16 %v339
    %v1169 = vunpack.c.l.b16 %v340
    %v1170 = vunpack.c.h.b16 %v340
    %v1171 = vpack.c.b16 %v663, %v659
    %v1172 = vpack.c.b16 %v664, %v660
    %v1173 = vpack.c.b16 %v665, %v661
    %v1174 = vpack.c.b16 %v666, %v662
    %v1175 = vpack.c.b16 %v671, %v667
    %v1176 = vpack.c.b16 %v672, %v668
    %v1177 = vpack.c.b16 %v673, %v669
    %v1178 = vpack.c.b16 %v674, %v670
    %v1179 = vpack.c.b16 %v679, %v675
    %v1180 = vpack.c.b16 %v680, %v676
    %v1181 = vpack.c.b16 %v681, %v677
    %v1182 = vpack.c.b16 %v682, %v678
    %v1183 = vpack.c.b16 %v687, %v683
    %v1184 = vpack.c.b16 %v688, %v684
    %v1185 = vpack.c.b16 %v689, %v685
    %v1186 = vpack.c.b16 %v690, %v686
    %v1187 = vpack.c.b16 %v695, %v691
    %v1188 = vpack.c.b16 %v696, %v692
    %v1189 = vpack.c.b16 %v697, %v693
    %v1190 = vpack.c.b16 %v698, %v694
    %v1191 = vpack.c.b16 %v703, %v699
    %v1192 = vpack.c.b16 %v704, %v700
    %v1193 = vpack.c.b16 %v705, %v701
    %v1194 = vpack.c.b16 %v706, %v702
    %v1195 = vpack.c.b16 %v711, %v707
    %v1196 = vpack.c.b16 %v712, %v708
    %v1197 = vpack.c.b16 %v713, %v709
    %v1198 = vpack.c.b16 %v714, %v710
    %v1199 = vpack.c.b16 %v719, %v715
    %v1200 = vpack.c.b16 %v720, %v716
    %v1201 = vpack.c.b16 %v721, %v717
    %v1202 = vpack.c.b16 %v722, %v718
    %v1203 = vpack.c.b16 %v727, %v723
    %v1204 = vpack.c.b16 %v728, %v724
    %v1205 = vpack.c.b16 %v729, %v725
    %v1206 = vpack.c.b16 %v730, %v726
    %v1207 = vpack.c.b16 %v735, %v731
    %v1208 = vpack.c.b16 %v736, %v732
    %v1209 = vpack.c.b16 %v737, %v733
    %v1210 = vpack.c.b16 %v738, %v734
    %v1211 = vpack.c.b16 %v743, %v739
    %v1212 = vpack.c.b16 %v744, %v740
    %v1213 = vpack.c.b16 %v745, %v741
    %v1214 = vpack.c.b16 %v746, %v742
    %v1215 = vpack.c.b16 %v751, %v747
    %v1216 = vpack.c.b16 %v752, %v748
    %v1217 = vpack.c.b16 %v753, %v749
    %v1218 = vpack.c.b16 %v754, %v750
    %v1219 = vpack.c.b16 %v759, %v755
    %v1220 = vpack.c.b16 %v760, %v756
    %v1221 = vpack.c.b16 %v761, %v757
    %v1222 = vpack.c.b16 %v762, %v758
    %v1223 = vpack.c.b16 %v767, %v763
    %v1224 = vpack.c.b16 %v768, %v764
    %v1225 = vpack.c.b16 %v769, %v765
    %v1226 = vpack.c.b16 %v770, %v766
    %v1227 = vpack.c.b16 %v775, %v771
    %v1228 = vpack.c.b16 %v776, %v772
    %v1229 = vpack.c.b16 %v777, %v773
    %v1230 = vpack.c.b16 %v778, %v774
    %v1231 = vpack.c.b16 %v783, %v779
    %v1232 = vpack.c.b16 %v784, %v780
    %v1233 = vpack.c.b16 %v785, %v781
    %v1234 = vpack.c.b16 %v786, %v782
    %v1235 = vpack.c.b16 %v791, %v787
    %v1236 = vpack.c.b16 %v792, %v788
    %v1237 = vpack.c.b16 %v793, %v789
    %v1238 = vpack.c.b16 %v794, %v790
    %v1239 = vpack.c.b16 %v799, %v795
    %v1240 = vpack.c.b16 %v800, %v796
    %v1241 = vpack.c.b16 %v801, %v797
    %v1242 = vpack.c.b16 %v802, %v798
    %v1243 = vpack.c.b16 %v807, %v803
    %v1244 = vpack.c.b16 %v808, %v804
    %v1245 = vpack.c.b16 %v809, %v805
    %v1246 = vpack.c.b16 %v810, %v806
    %v1247 = vpack.c.b16 %v815, %v811
    %v1248 = vpack.c.b16 %v816, %v812
    %v1249 = vpack.c.b16 %v817, %v813
    %v1250 = vpack.c.b16 %v818, %v814
    %v1251 = vpack.c.b16 %v823, %v819
    %v1252 = vpack.c.b16 %v824, %v820
    %v1253 = vpack.c.b16 %v825, %v821
    %v1254 = vpack.c.b16 %v826, %v822
    %v1255 = vpack.c.b16 %v831, %v827
    %v1256 = vpack.c.b16 %v832, %v828
    %v1257 = vpack.c.b16 %v833, %v829
    %v1258 = vpack.c.b16 %v834, %v830
    %v1259 = vpack.c.b16 %v839, %v835
    %v1260 = vpack.c.b16 %v840, %v836
    %v1261 = vpack.c.b16 %v841, %v837
    %v1262 = vpack.c.b16 %v842, %v838
    %v1263 = vpack.c.b16 %v847, %v843
    %v1264 = vpack.c.b16 %v848, %v844
    %v1265 = vpack.c.b16 %v849, %v845
    %v1266 = vpack.c.b16 %v850, %v846
    %v1267 = vpack.c.b16 %v855, %v851
    %v1268 = vpack.c.b16 %v856, %v852
    %v1269 = vpack.c.b16 %v857, %v853
    %v1270 = vpack.c.b16 %v858, %v854
    %v1271 = vpack.c.b16 %v863, %v859
    %v1272 = vpack.c.b16 %v864, %v860
    %v1273 = vpack.c.b16 %v865, %v861
    %v1274 = vpack.c.b16 %v866, %v862
    %v1275 = vpack.c.b16 %v871, %v867
    %v1276 = vpack.c.b16 %v872, %v868
    %v1277 = vpack.c.b16 %v873, %v869
    %v1278 = vpack.c.b16 %v874, %v870
    %v1279 = vpack.c.b16 %v879, %v875
    %v1280 = vpack.c.b16 %v880, %v876
    %v1281 = vpack.c.b16 %v881, %v877
    %v1282 = vpack.c.b16 %v882, %v878
    %v1283 = vpack.c.b16 %v887, %v883
    %v1284 = vpack.c.b16 %v888, %v884
    %v1285 = vpack.c.b16 %v889, %v885
    %v1286 = vpack.c.b16 %v890, %v886
    %v1287 = vpack.c.b16 %v895, %v891
    %v1288 = vpack.c.b16 %v896, %v892
    %v1289 = vpack.c.b16 %v897, %v893
    %v1290 = vpack.c.b16 %v898, %v894
    %v1291 = vpack.c.b16 %v903, %v899
    %v1292 = vpack.c.b16 %v904, %v900
    %v1293 = vpack.c.b16 %v905, %v901
    %v1294 = vpack.c.b16 %v906, %v902
    %v1295 = vpack.c.b16 %v911, %v907
    %v1296 = vpack.c.b16 %v912, %v908
    %v1297 = vpack.c.b16 %v913, %v909
    %v1298 = vpack.c.b16 %v914, %v910
    %v1299 = vpack.c.b16 %v919, %v915
    %v1300 = vpack.c.b16 %v920, %v916
    %v1301 = vpack.c.b16 %v921, %v917
    %v1302 = vpack.c.b16 %v922, %v918
    %v1303 = vpack.c.b16 %v927, %v923
    %v1304 = vpack.c.b16 %v928, %v924
    %v1305 = vpack.c.b16 %v929, %v925
    %v1306 = vpack.c.b16 %v930, %v926
    %v1307 = vpack.c.b16 %v935, %v931
    %v1308 = vpack.c.b16 %v936, %v932
    %v1309 = vpack.c.b16 %v937, %v933
    %v1310 = vpack.c.b16 %v938, %v934
    %v1311 = vpack.c.b16 %v943, %v939
    %v1312 = vpack.c.b16 %v944, %v940
    %v1313 = vpack.c.b16 %v945, %v941
    %v1314 = vpack.c.b16 %v946, %v942
    %v1315 = vpack.c.b16 %v951, %v947
    %v1316 = vpack.c.b16 %v952, %v948
    %v1317 = vpack.c.b16 %v953, %v949
    %v1318 = vpack.c.b16 %v954, %v950
    %v1319 = vpack.c.b16 %v959, %v955
    %v1320 = vpack.c.b16 %v960, %v956
    %v1321 = vpack.c.b16 %v961, %v957
    %v1322 = vpack.c.b16 %v962, %v958
    %v1323 = vpack.c.b16 %v967, %v963
    %v1324 = vpack.c.b16 %v968, %v964
    %v1325 = vpack.c.b16 %v969, %v965
    %v1326 = vpack.c.b16 %v970, %v966
    %v1327 = vpack.c.b16 %v975, %v971
    %v1328 = vpack.c.b16 %v976, %v972
    %v1329 = vpack.c.b16 %v977, %v973
    %v1330 = vpack.c.b16 %v978, %v974
    %v1331 = vpack.c.b16 %v983, %v979
    %v1332 = vpack.c.b16 %v984, %v980
    %v1333 = vpack.c.b16 %v985, %v981
    %v1334 = vpack.c.b16 %v986, %v982
    %v1335 = vpack.c.b16 %v991, %v987
    %v1336 = vpack.c.b16 %v992, %v988
    %v1337 = vpack.c.b16 %v993, %v989
    %v1338 = vpack.c.b16 %v994, %v990
    %v1339 = vpack.c.b16 %v999, %v995
    %v1340 = vpack.c.b16 %v1000, %v996
    %v1341 = vpack.c.b16 %v1001, %v997
    %v1342 = vpack.c.b16 %v1002, %v998
    %v1343 = vpack.c.b16 %v1007, %v1003
    %v1344 = vpack.c.b16 %v1008, %v1004
    %v1345 = vpack.c.b16 %v1009, %v1005
    %v1346 = vpack.c.b16 %v1010, %v1006
    %v1347 = vpack.c.b16 %v1015, %v1011
    %v1348 = vpack.c.b16 %v1016, %v1012
    %v1349 = vpack.c.b16 %v1017, %v1013
    %v1350 = vpack.c.b16 %v1018, %v1014
    %v1351 = vpack.c.b16 %v1023, %v1019
    %v1352 = vpack.c.b16 %v1024, %v1020
    %v1353 = vpack.c.b16 %v1025, %v1021
    %v1354 = vpack.c.b16 %v1026, %v1022
    %v1355 = vpack.c.b16 %v1031, %v1027
    %v1356 = vpack.c.b16 %v1032, %v1028
    %v1357 = vpack.c.b16 %v1033, %v1029
    %v1358 = vpack.c.b16 %v1034, %v1030
    %v1359 = vpack.c.b16 %v1039, %v1035
    %v1360 = vpack.c.b16 %v1040, %v1036
    %v1361 = vpack.c.b16 %v1041, %v1037
    %v1362 = vpack.c.b16 %v1042, %v1038
    %v1363 = vpack.c.b16 %v1047, %v1043
    %v1364 = vpack.c.b16 %v1048, %v1044
    %v1365 = vpack.c.b16 %v1049, %v1045
    %v1366 = vpack.c.b16 %v1050, %v1046
    %v1367 = vpack.c.b16 %v1055, %v1051
    %v1368 = vpack.c.b16 %v1056, %v1052
    %v1369 = vpack.c.b16 %v1057, %v1053
    %v1370 = vpack.c.b16 %v1058, %v1054
    %v1371 = vpack.c.b16 %v1063, %v1059
    %v1372 = vpack.c.b16 %v1064, %v1060
    %v1373 = vpack.c.b16 %v1065, %v1061
    %v1374 = vpack.c.b16 %v1066, %v1062
    %v1375 = vpack.c.b16 %v1071, %v1067
    %v1376 = vpack.c.b16 %v1072, %v1068
    %v1377 = vpack.c.b16 %v1073, %v1069
    %v1378 = vpack.c.b16 %v1074, %v1070
    %v1379 = vpack.c.b16 %v1079, %v1075
    %v1380 = vpack.c.b16 %v1080, %v1076
    %v1381 = vpack.c.b16 %v1081, %v1077
    %v1382 = vpack.c.b16 %v1082, %v1078
    %v1383 = vpack.c.b16 %v1087, %v1083
    %v1384 = vpack.c.b16 %v1088, %v1084
    %v1385 = vpack.c.b16 %v1089, %v1085
    %v1386 = vpack.c.b16 %v1090, %v1086
    %v1387 = vpack.c.b16 %v1095, %v1091
    %v1388 = vpack.c.b16 %v1096, %v1092
    %v1389 = vpack.c.b16 %v1097, %v1093
    %v1390 = vpack.c.b16 %v1098, %v1094
    %v1391 = vpack.c.b16 %v1103, %v1099
    %v1392 = vpack.c.b16 %v1104, %v1100
    %v1393 = vpack.c.b16 %v1105, %v1101
    %v1394 = vpack.c.b16 %v1106, %v1102
    %v1395 = vpack.c.b16 %v1111, %v1107
    %v1396 = vpack.c.b16 %v1112, %v1108
    %v1397 = vpack.c.b16 %v1113, %v1109
    %v1398 = vpack.c.b16 %v1114, %v1110
    %v1399 = vpack.c.b16 %v1119, %v1115
    %v1400 = vpack.c.b16 %v1120, %v1116
    %v1401 = vpack.c.b16 %v1121, %v1117
    %v1402 = vpack.c.b16 %v1122, %v1118
    %v1403 = vpack.c.b16 %v1127, %v1123
    %v1404 = vpack.c.b16 %v1128, %v1124
    %v1405 = vpack.c.b16 %v1129, %v1125
    %v1406 = vpack.c.b16 %v1130, %v1126
    %v1407 = vpack.c.b16 %v1135, %v1131
    %v1408 = vpack.c.b16 %v1136, %v1132
    %v1409 = vpack.c.b16 %v1137, %v1133
    %v1410 = vpack.c.b16 %v1138, %v1134
    %v1411 = vpack.c.b16 %v1143, %v1139
    %v1412 = vpack.c.b16 %v1144, %v1140
    %v1413 = vpack.c.b16 %v1145, %v1141
    %v1414 = vpack.c.b16 %v1146, %v1142
    %v1415 = vpack.c.b16 %v1151, %v1147
    %v1416 = vpack.c.b16 %v1152, %v1148
    %v1417 = vpack.c.b16 %v1153, %v1149
    %v1418 = vpack.c.b16 %v1154, %v1150
    %v1419 = vpack.c.b16 %v1159, %v1155
    %v1420 = vpack.c.b16 %v1160, %v1156
    %v1421 = vpack.c.b16 %v1161, %v1157
    %v1422 = vpack.c.b16 %v1162, %v1158
    %v1423 = vpack.c.b16 %v1167, %v1163
    %v1424 = vpack.c.b16 %v1168, %v1164
    %v1425 = vpack.c.b16 %v1169, %v1165
    %v1426 = vpack.c.b16 %v1170, %v1166
    %1683 = vmatprep.subr.bf16.mxu0 %v1172
    %1684 = vmatpush1.bf16.msra.mxu0 %v1171
    %1685 = vmatprep.subr.bf16.mxu0 %v1176
    %1686 = vmatpush1.bf16.msra.mxu0 %v1175
    %1687 = vmatprep.subr.bf16.mxu0 %v1180
    %1688 = vmatpush1.bf16.msra.mxu0 %v1179
    %1689 = vmatprep.subr.bf16.mxu0 %v1184
    %1690 = vmatpush1.bf16.msra.mxu0 %v1183
    %1691 = vmatprep.subr.bf16.mxu0 %v1188
    %1692 = vmatpush1.bf16.msra.mxu0 %v1187
    %1693 = vmatprep.subr.bf16.mxu0 %v1192
    %1694 = vmatpush1.bf16.msra.mxu0 %v1191
    %1695 = vmatprep.subr.bf16.mxu0 %v1196
    %1696 = vmatpush1.bf16.msra.mxu0 %v1195
    %1697 = vmatprep.subr.bf16.mxu0 %v1200
    %1698 = vmatpush1.bf16.msra.mxu0 %v1199
    %1699 = vmatprep.subr.bf16.mxu0 %v1204
    %1700 = vmatpush1.bf16.msra.mxu0 %v1203
    %1701 = vmatprep.subr.bf16.mxu0 %v1208
    %1702 = vmatpush1.bf16.msra.mxu0 %v1207
    %1703 = vmatprep.subr.bf16.mxu0 %v1212
    %1704 = vmatpush1.bf16.msra.mxu0 %v1211
    %1705 = vmatprep.subr.bf16.mxu0 %v1216
    %1706 = vmatpush1.bf16.msra.mxu0 %v1215
    %1707 = vmatprep.subr.bf16.mxu0 %v1220
    %1708 = vmatpush1.bf16.msra.mxu0 %v1219
    %1709 = vmatprep.subr.bf16.mxu0 %v1224
    %1710 = vmatpush1.bf16.msra.mxu0 %v1223
    %1711 = vmatprep.subr.bf16.mxu0 %v1228
    %1712 = vmatpush1.bf16.msra.mxu0 %v1227
    %1713 = vmatprep.subr.bf16.mxu0 %v1232
    %1714 = vmatpush1.bf16.msra.mxu0 %v1231
    %1715 = vmatprep.mubr.bf16.mxu0 %v388
    %1716 = vmatmul.mubr.bf16.gmra.mrb[0].mxu0 %v387
    %v1717 = vpop.f32.mrb[0].mxu0
    %v1718 = vadd.f32 %v346, %v1717
    %v1719 = vpop.f32.mrb[0].mxu0
    %v1720 = vadd.f32 %v350, %v1719
    %v1721 = vpop.f32.mrb[0].mxu0
    %v1722 = vadd.f32 %v346, %v1721
    %v1723 = vpop.f32.mrb[0].mxu0
    %v1724 = vadd.f32 %v350, %v1723
    %1725 = vdwg.mxu0
    %1726 = vmatprep.subr.bf16.mxu0 %v1236
    %1727 = vmatpush1.bf16.msra.mxu0 %v1235
    %1728 = vmatprep.subr.bf16.mxu0 %v1240
    %1729 = vmatpush1.bf16.msra.mxu0 %v1239
    %1730 = vmatprep.subr.bf16.mxu0 %v1244
    %1731 = vmatpush1.bf16.msra.mxu0 %v1243
    %1732 = vmatprep.subr.bf16.mxu0 %v1248
    %1733 = vmatpush1.bf16.msra.mxu0 %v1247
    %1734 = vmatprep.subr.bf16.mxu0 %v1252
    %1735 = vmatpush1.bf16.msra.mxu0 %v1251
    %1736 = vmatprep.subr.bf16.mxu0 %v1256
    %1737 = vmatpush1.bf16.msra.mxu0 %v1255
    %1738 = vmatprep.subr.bf16.mxu0 %v1260
    %1739 = vmatpush1.bf16.msra.mxu0 %v1259
    %1740 = vmatprep.subr.bf16.mxu0 %v1264
    %1741 = vmatpush1.bf16.msra.mxu0 %v1263
    %1742 = vmatprep.subr.bf16.mxu0 %v1268
    %1743 = vmatpush1.bf16.msra.mxu0 %v1267
    %1744 = vmatprep.subr.bf16.mxu0 %v1272
    %1745 = vmatpush1.bf16.msra.mxu0 %v1271
    %1746 = vmatprep.subr.bf16.mxu0 %v1276
    %1747 = vmatpush1.bf16.msra.mxu0 %v1275
    %1748 = vmatprep.subr.bf16.mxu0 %v1280
    %1749 = vmatpush1.bf16.msra.mxu0 %v1279
    %1750 = vmatprep.subr.bf16.mxu0 %v1284
    %1751 = vmatpush1.bf16.msra.mxu0 %v1283
    %1752 = vmatprep.subr.bf16.mxu0 %v1288
    %1753 = vmatpush1.bf16.msra.mxu0 %v1287
    %1754 = vmatprep.subr.bf16.mxu0 %v1292
    %1755 = vmatpush1.bf16.msra.mxu0 %v1291
    %1756 = vmatprep.subr.bf16.mxu0 %v1296
    %1757 = vmatpush1.bf16.msra.mxu0 %v1295
    %1758 = vmatprep.mubr.bf16.mxu0 %v390
    %1759 = vmatmul.mubr.bf16.gmra.mrb[0].mxu0 %v389
    %v1760 = vpop.f32.mrb[0].mxu0
    %v1761 = vadd.f32 %v1718, %v1760
    %v1762 = vpop.f32.mrb[0].mxu0
    %v1763 = vadd.f32 %v1720, %v1762
    %v1764 = vpop.f32.mrb[0].mxu0
    %v1765 = vadd.f32 %v1722, %v1764
    %v1766 = vpop.f32.mrb[0].mxu0
    %v1767 = vadd.f32 %v1724, %v1766
    %1768 = vdwg.mxu0
    %1769 = vmatprep.subr.bf16.mxu0 %v1300
    %1770 = vmatpush1.bf16.msra.mxu0 %v1299
    %1771 = vmatprep.subr.bf16.mxu0 %v1304
    %1772 = vmatpush1.bf16.msra.mxu0 %v1303
    %1773 = vmatprep.subr.bf16.mxu0 %v1308
    %1774 = vmatpush1.bf16.msra.mxu0 %v1307
    %1775 = vmatprep.subr.bf16.mxu0 %v1312
    %1776 = vmatpush1.bf16.msra.mxu0 %v1311
    %1777 = vmatprep.subr.bf16.mxu0 %v1316
    %1778 = vmatpush1.bf16.msra.mxu0 %v1315
    %1779 = vmatprep.subr.bf16.mxu0 %v1320
    %1780 = vmatpush1.bf16.msra.mxu0 %v1319
    %1781 = vmatprep.subr.bf16.mxu0 %v1324
    %1782 = vmatpush1.bf16.msra.mxu0 %v1323
    %1783 = vmatprep.subr.bf16.mxu0 %v1328
    %1784 = vmatpush1.bf16.msra.mxu0 %v1327
    %1785 = vmatprep.subr.bf16.mxu0 %v1332
    %1786 = vmatpush1.bf16.msra.mxu0 %v1331
    %1787 = vmatprep.subr.bf16.mxu0 %v1336
    %1788 = vmatpush1.bf16.msra.mxu0 %v1335
    %1789 = vmatprep.subr.bf16.mxu0 %v1340
    %1790 = vmatpush1.bf16.msra.mxu0 %v1339
    %1791 = vmatprep.subr.bf16.mxu0 %v1344
    %1792 = vmatpush1.bf16.msra.mxu0 %v1343
    %1793 = vmatprep.subr.bf16.mxu0 %v1348
    %1794 = vmatpush1.bf16.msra.mxu0 %v1347
    %1795 = vmatprep.subr.bf16.mxu0 %v1352
    %1796 = vmatpush1.bf16.msra.mxu0 %v1351
    %1797 = vmatprep.subr.bf16.mxu0 %v1356
    %1798 = vmatpush1.bf16.msra.mxu0 %v1355
    %1799 = vmatprep.subr.bf16.mxu0 %v1360
    %1800 = vmatpush1.bf16.msra.mxu0 %v1359
    %1801 = vmatprep.mubr.bf16.mxu0 %v392
    %1802 = vmatmul.mubr.bf16.gmra.mrb[0].mxu0 %v391
    %v1803 = vpop.f32.mrb[0].mxu0
    %v1804 = vadd.f32 %v1761, %v1803
    %v1805 = vpop.f32.mrb[0].mxu0
    %v1806 = vadd.f32 %v1763, %v1805
    %v1807 = vpop.f32.mrb[0].mxu0
    %v1808 = vadd.f32 %v1765, %v1807
    %v1809 = vpop.f32.mrb[0].mxu0
    %v1810 = vadd.f32 %v1767, %v1809
    %1811 = vdwg.mxu0
    %1812 = vmatprep.subr.bf16.mxu0 %v1364
    %1813 = vmatpush1.bf16.msra.mxu0 %v1363
    %1814 = vmatprep.subr.bf16.mxu0 %v1368
    %1815 = vmatpush1.bf16.msra.mxu0 %v1367
    %1816 = vmatprep.subr.bf16.mxu0 %v1372
    %1817 = vmatpush1.bf16.msra.mxu0 %v1371
    %1818 = vmatprep.subr.bf16.mxu0 %v1376
    %1819 = vmatpush1.bf16.msra.mxu0 %v1375
    %1820 = vmatprep.subr.bf16.mxu0 %v1380
    %1821 = vmatpush1.bf16.msra.mxu0 %v1379
    %1822 = vmatprep.subr.bf16.mxu0 %v1384
    %1823 = vmatpush1.bf16.msra.mxu0 %v1383
    %1824 = vmatprep.subr.bf16.mxu0 %v1388
    %1825 = vmatpush1.bf16.msra.mxu0 %v1387
    %1826 = vmatprep.subr.bf16.mxu0 %v1392
    %1827 = vmatpush1.bf16.msra.mxu0 %v1391
    %1828 = vmatprep.subr.bf16.mxu0 %v1396
    %1829 = vmatpush1.bf16.msra.mxu0 %v1395
    %1830 = vmatprep.subr.bf16.mxu0 %v1400
    %1831 = vmatpush1.bf16.msra.mxu0 %v1399
    %1832 = vmatprep.subr.bf16.mxu0 %v1404
    %1833 = vmatpush1.bf16.msra.mxu0 %v1403
    %1834 = vmatprep.subr.bf16.mxu0 %v1408
    %1835 = vmatpush1.bf16.msra.mxu0 %v1407
    %1836 = vmatprep.subr.bf16.mxu0 %v1412
    %1837 = vmatpush1.bf16.msra.mxu0 %v1411
    %1838 = vmatprep.subr.bf16.mxu0 %v1416
    %1839 = vmatpush1.bf16.msra.mxu0 %v1415
    %1840 = vmatprep.subr.bf16.mxu0 %v1420
    %1841 = vmatpush1.bf16.msra.mxu0 %v1419
    %1842 = vmatprep.subr.bf16.mxu0 %v1424
    %1843 = vmatpush1.bf16.msra.mxu0 %v1423
    %1844 = vmatprep.mubr.bf16.mxu0 %v394
    %1845 = vmatmul.mubr.bf16.gmra.mrb[0].mxu0 %v393
    %v1846 = vpop.f32.mrb[0].mxu0
    %v1847 = vadd.f32 %v1804, %v1846
    %v1848 = vpop.f32.mrb[0].mxu0
    %v1849 = vadd.f32 %v1806, %v1848
    %v1850 = vpop.f32.mrb[0].mxu0
    %v1851 = vadd.f32 %v1808, %v1850
    %v1852 = vpop.f32.mrb[0].mxu0
    %v1853 = vadd.f32 %v1810, %v1852
    %1854 = vdwg.mxu0
    %1855 = vmatprep.subr.bf16.mxu0 %v1174
    %1856 = vmatpush1.bf16.msra.mxu0 %v1173
    %1857 = vmatprep.subr.bf16.mxu0 %v1178
    %1858 = vmatpush1.bf16.msra.mxu0 %v1177
    %1859 = vmatprep.subr.bf16.mxu0 %v1182
    %1860 = vmatpush1.bf16.msra.mxu0 %v1181
    %1861 = vmatprep.subr.bf16.mxu0 %v1186
    %1862 = vmatpush1.bf16.msra.mxu0 %v1185
    %1863 = vmatprep.subr.bf16.mxu0 %v1190
    %1864 = vmatpush1.bf16.msra.mxu0 %v1189
    %1865 = vmatprep.subr.bf16.mxu0 %v1194
    %1866 = vmatpush1.bf16.msra.mxu0 %v1193
    %1867 = vmatprep.subr.bf16.mxu0 %v1198
    %1868 = vmatpush1.bf16.msra.mxu0 %v1197
    %1869 = vmatprep.subr.bf16.mxu0 %v1202
    %1870 = vmatpush1.bf16.msra.mxu0 %v1201
    %1871 = vmatprep.subr.bf16.mxu0 %v1206
    %1872 = vmatpush1.bf16.msra.mxu0 %v1205
    %1873 = vmatprep.subr.bf16.mxu0 %v1210
    %1874 = vmatpush1.bf16.msra.mxu0 %v1209
    %1875 = vmatprep.subr.bf16.mxu0 %v1214
    %1876 = vmatpush1.bf16.msra.mxu0 %v1213
    %1877 = vmatprep.subr.bf16.mxu0 %v1218
    %1878 = vmatpush1.bf16.msra.mxu0 %v1217
    %1879 = vmatprep.subr.bf16.mxu0 %v1222
    %1880 = vmatpush1.bf16.msra.mxu0 %v1221
    %1881 = vmatprep.subr.bf16.mxu0 %v1226
    %1882 = vmatpush1.bf16.msra.mxu0 %v1225
    %1883 = vmatprep.subr.bf16.mxu0 %v1230
    %1884 = vmatpush1.bf16.msra.mxu0 %v1229
    %1885 = vmatprep.subr.bf16.mxu0 %v1234
    %1886 = vmatpush1.bf16.msra.mxu0 %v1233
    %1887 = vmatprep.mubr.bf16.mxu0 %v388
    %1888 = vmatmul.mubr.bf16.gmra.mrb[0].mxu0 %v387
    %v1889 = vpop.f32.mrb[0].mxu0
    %v1890 = vadd.f32 %v354, %v1889
    %v1891 = vpop.f32.mrb[0].mxu0
    %v1892 = vadd.f32 %v358, %v1891
    %v1893 = vpop.f32.mrb[0].mxu0
    %v1894 = vadd.f32 %v354, %v1893
    %v1895 = vpop.f32.mrb[0].mxu0
    %v1896 = vadd.f32 %v358, %v1895
    %1897 = vdwg.mxu0
    %1898 = vmatprep.subr.bf16.mxu0 %v1238
    %1899 = vmatpush1.bf16.msra.mxu0 %v1237
    %1900 = vmatprep.subr.bf16.mxu0 %v1242
    %1901 = vmatpush1.bf16.msra.mxu0 %v1241
    %1902 = vmatprep.subr.bf16.mxu0 %v1246
    %1903 = vmatpush1.bf16.msra.mxu0 %v1245
    %1904 = vmatprep.subr.bf16.mxu0 %v1250
    %1905 = vmatpush1.bf16.msra.mxu0 %v1249
    %1906 = vmatprep.subr.bf16.mxu0 %v1254
    %1907 = vmatpush1.bf16.msra.mxu0 %v1253
    %1908 = vmatprep.subr.bf16.mxu0 %v1258
    %1909 = vmatpush1.bf16.msra.mxu0 %v1257
    %1910 = vmatprep.subr.bf16.mxu0 %v1262
    %1911 = vmatpush1.bf16.msra.mxu0 %v1261
    %1912 = vmatprep.subr.bf16.mxu0 %v1266
    %1913 = vmatpush1.bf16.msra.mxu0 %v1265
    %1914 = vmatprep.subr.bf16.mxu0 %v1270
    %1915 = vmatpush1.bf16.msra.mxu0 %v1269
    %1916 = vmatprep.subr.bf16.mxu0 %v1274
    %1917 = vmatpush1.bf16.msra.mxu0 %v1273
    %1918 = vmatprep.subr.bf16.mxu0 %v1278
    %1919 = vmatpush1.bf16.msra.mxu0 %v1277
    %1920 = vmatprep.subr.bf16.mxu0 %v1282
    %1921 = vmatpush1.bf16.msra.mxu0 %v1281
    %1922 = vmatprep.subr.bf16.mxu0 %v1286
    %1923 = vmatpush1.bf16.msra.mxu0 %v1285
    %1924 = vmatprep.subr.bf16.mxu0 %v1290
    %1925 = vmatpush1.bf16.msra.mxu0 %v1289
    %1926 = vmatprep.subr.bf16.mxu0 %v1294
    %1927 = vmatpush1.bf16.msra.mxu0 %v1293
    %1928 = vmatprep.subr.bf16.mxu0 %v1298
    %1929 = vmatpush1.bf16.msra.mxu0 %v1297
    %1930 = vmatprep.mubr.bf16.mxu0 %v390
    %1931 = vmatmul.mubr.bf16.gmra.mrb[0].mxu0 %v389
    %v1932 = vpop.f32.mrb[0].mxu0
    %v1933 = vadd.f32 %v1890, %v1932
    %v1934 = vpop.f32.mrb[0].mxu0
    %v1935 = vadd.f32 %v1892, %v1934
    %v1936 = vpop.f32.mrb[0].mxu0
    %v1937 = vadd.f32 %v1894, %v1936
    %v1938 = vpop.f32.mrb[0].mxu0
    %v1939 = vadd.f32 %v1896, %v1938
    %1940 = vdwg.mxu0
    %1941 = vmatprep.subr.bf16.mxu0 %v1302
    %1942 = vmatpush1.bf16.msra.mxu0 %v1301
    %1943 = vmatprep.subr.bf16.mxu0 %v1306
    %1944 = vmatpush1.bf16.msra.mxu0 %v1305
    %1945 = vmatprep.subr.bf16.mxu0 %v1310
    %1946 = vmatpush1.bf16.msra.mxu0 %v1309
    %1947 = vmatprep.subr.bf16.mxu0 %v1314
    %1948 = vmatpush1.bf16.msra.mxu0 %v1313
    %1949 = vmatprep.subr.bf16.mxu0 %v1318
    %1950 = vmatpush1.bf16.msra.mxu0 %v1317
    %1951 = vmatprep.subr.bf16.mxu0 %v1322
    %1952 = vmatpush1.bf16.msra.mxu0 %v1321
    %1953 = vmatprep.subr.bf16.mxu0 %v1326
    %1954 = vmatpush1.bf16.msra.mxu0 %v1325
    %1955 = vmatprep.subr.bf16.mxu0 %v1330
    %1956 = vmatpush1.bf16.msra.mxu0 %v1329
    %1957 = vmatprep.subr.bf16.mxu0 %v1334
    %1958 = vmatpush1.bf16.msra.mxu0 %v1333
    %1959 = vmatprep.subr.bf16.mxu0 %v1338
    %1960 = vmatpush1.bf16.msra.mxu0 %v1337
    %1961 = vmatprep.subr.bf16.mxu0 %v1342
    %1962 = vmatpush1.bf16.msra.mxu0 %v1341
    %1963 = vmatprep.subr.bf16.mxu0 %v1346
    %1964 = vmatpush1.bf16.msra.mxu0 %v1345
    %1965 = vmatprep.subr.bf16.mxu0 %v1350
    %1966 = vmatpush1.bf16.msra.mxu0 %v1349
    %1967 = vmatprep.subr.bf16.mxu0 %v1354
    %1968 = vmatpush1.bf16.msra.mxu0 %v1353
    %1969 = vmatprep.subr.bf16.mxu0 %v1358
    %1970 = vmatpush1.bf16.msra.mxu0 %v1357
    %1971 = vmatprep.subr.bf16.mxu0 %v1362
    %1972 = vmatpush1.bf16.msra.mxu0 %v1361
    %1973 = vmatprep.mubr.bf16.mxu0 %v392
    %1974 = vmatmul.mubr.bf16.gmra.mrb[0].mxu0 %v391
    %v1975 = vpop.f32.mrb[0].mxu0
    %v1976 = vadd.f32 %v1933, %v1975
    %v1977 = vpop.f32.mrb[0].mxu0
    %v1978 = vadd.f32 %v1935, %v1977
    %v1979 = vpop.f32.mrb[0].mxu0
    %v1980 = vadd.f32 %v1937, %v1979
    %v1981 = vpop.f32.mrb[0].mxu0
    %v1982 = vadd.f32 %v1939, %v1981
    %1983 = vdwg.mxu0
    %1984 = vmatprep.subr.bf16.mxu0 %v1366
    %1985 = vmatpush1.bf16.msra.mxu0 %v1365
    %1986 = vmatprep.subr.bf16.mxu0 %v1370
    %1987 = vmatpush1.bf16.msra.mxu0 %v1369
    %1988 = vmatprep.subr.bf16.mxu0 %v1374
    %1989 = vmatpush1.bf16.msra.mxu0 %v1373
    %1990 = vmatprep.subr.bf16.mxu0 %v1378
    %1991 = vmatpush1.bf16.msra.mxu0 %v1377
    %1992 = vmatprep.subr.bf16.mxu0 %v1382
    %1993 = vmatpush1.bf16.msra.mxu0 %v1381
    %1994 = vmatprep.subr.bf16.mxu0 %v1386
    %1995 = vmatpush1.bf16.msra.mxu0 %v1385
    %1996 = vmatprep.subr.bf16.mxu0 %v1390
    %1997 = vmatpush1.bf16.msra.mxu0 %v1389
    %1998 = vmatprep.subr.bf16.mxu0 %v1394
    %1999 = vmatpush1.bf16.msra.mxu0 %v1393
    %2000 = vmatprep.subr.bf16.mxu0 %v1398
    %2001 = vmatpush1.bf16.msra.mxu0 %v1397
    %2002 = vmatprep.subr.bf16.mxu0 %v1402
    %2003 = vmatpush1.bf16.msra.mxu0 %v1401
    %2004 = vmatprep.subr.bf16.mxu0 %v1406
    %2005 = vmatpush1.bf16.msra.mxu0 %v1405
    %2006 = vmatprep.subr.bf16.mxu0 %v1410
    %2007 = vmatpush1.bf16.msra.mxu0 %v1409
    %2008 = vmatprep.subr.bf16.mxu0 %v1414
    %2009 = vmatpush1.bf16.msra.mxu0 %v1413
    %2010 = vmatprep.subr.bf16.mxu0 %v1418
    %2011 = vmatpush1.bf16.msra.mxu0 %v1417
    %2012 = vmatprep.subr.bf16.mxu0 %v1422
    %2013 = vmatpush1.bf16.msra.mxu0 %v1421
    %2014 = vmatprep.subr.bf16.mxu0 %v1426
    %2015 = vmatpush1.bf16.msra.mxu0 %v1425
    %2016 = vmatprep.mubr.bf16.mxu0 %v394
    %2017 = vmatmul.mubr.bf16.gmra.mrb[0].mxu0 %v393
    %v2018 = vpop.f32.mrb[0].mxu0
    %v2019 = vadd.f32 %v1976, %v2018
    %v2020 = vpop.f32.mrb[0].mxu0
    %v2021 = vadd.f32 %v1978, %v2020
    %v2022 = vpop.f32.mrb[0].mxu0
    %v2023 = vadd.f32 %v1980, %v2022
    %v2024 = vpop.f32.mrb[0].mxu0
    %v2025 = vadd.f32 %v1982, %v2024
    %2026 = vdwg.mxu0
    %s2027 = sld [smem:[#allocation2]]
    %vm2028 = vcmp.gt.f32.partialorder %v1847, 0.0
    %vm2029 = vcmp.gt.f32.partialorder %v1849, 0.0
    %vm2030 = vcmp.gt.f32.partialorder %v2019, 0.0
    %vm2031 = vcmp.gt.f32.partialorder %v2021, 0.0
    %vm2032 = vcmp.gt.f32.partialorder %v1851, 0.0
    %vm2033 = vcmp.gt.f32.partialorder %v1853, 0.0
    %vm2034 = vcmp.gt.f32.partialorder %v2023, 0.0
    %vm2035 = vcmp.gt.f32.partialorder %v2025, 0.0
    %v2036 = vstv %s2027
    %v2037 = vmul.f32 %v2036, %v1847
    %v2038 = vmul.f32 %v2036, %v1849
    %v2039 = vmul.f32 %v2036, %v2019
    %v2040 = vmul.f32 %v2036, %v2021
    %v2041 = vmul.f32 %v2036, %v1851
    %v2042 = vmul.f32 %v2036, %v1853
    %v2043 = vmul.f32 %v2036, %v2023
    %v2044 = vmul.f32 %v2036, %v2025
    %v2045 = vsel %vm2028, %v1847, %v2037
    %v2046 = vsel %vm2029, %v1849, %v2038
    %v2047 = vsel %vm2030, %v2019, %v2039
    %v2048 = vsel %vm2031, %v2021, %v2040
    %v2049 = vsel %vm2032, %v1851, %v2041
    %v2050 = vsel %vm2033, %v1853, %v2042
    %v2051 = vsel %vm2034, %v2023, %v2043
    %v2052 = vsel %vm2035, %v2025, %v2044
    %v2053 = vpack.c.bf16 %v2049, %v2045
    %v2054 = vpack.c.bf16 %v2050, %v2046
    %v2055 = vpack.c.bf16 %v2051, %v2047
    %v2056 = vpack.c.bf16 %v2052, %v2048
    %v2057 = vld [vmem:[#allocation10] sm:$0xff]
    %v2058 = vld [vmem:[#allocation10 + $0x8] sm:$0xff]
    %v2059 = vld [vmem:[#allocation10 + $0x10] sm:$0xff]
    %v2060 = vld [vmem:[#allocation10 + $0x18] sm:$0xff]
    %v2061 = vld [vmem:[#allocation10 + $0x20] sm:$0xff]
    %v2062 = vld [vmem:[#allocation10 + $0x28] sm:$0xff]
    %v2063 = vld [vmem:[#allocation10 + $0x30] sm:$0xff]
    %v2064 = vld [vmem:[#allocation10 + $0x38] sm:$0xff]
    %v2065 = vld [vmem:[#allocation10 + $0x40] sm:$0xff]
    %v2066 = vld [vmem:[#allocation10 + $0x48] sm:$0xff]
    %v2067 = vld [vmem:[#allocation10 + $0x50] sm:$0xff]
    %v2068 = vld [vmem:[#allocation10 + $0x58] sm:$0xff]
    %v2069 = vld [vmem:[#allocation10 + $0x60] sm:$0xff]
    %v2070 = vld [vmem:[#allocation10 + $0x68] sm:$0xff]
    %v2071 = vld [vmem:[#allocation10 + $0x70] sm:$0xff]
    %v2072 = vld [vmem:[#allocation10 + $0x78] sm:$0xff]
    %v2073 = vld [vmem:[#allocation10 + $0x80] sm:$0xff]
    %v2074 = vld [vmem:[#allocation10 + $0x88] sm:$0xff]
    %v2075 = vld [vmem:[#allocation10 + $0x90] sm:$0xff]
    %v2076 = vld [vmem:[#allocation10 + $0x98] sm:$0xff]
    %v2077 = vld [vmem:[#allocation10 + $0xa0] sm:$0xff]
    %v2078 = vld [vmem:[#allocation10 + $0xa8] sm:$0xff]
    %v2079 = vld [vmem:[#allocation10 + $0xb0] sm:$0xff]
    %v2080 = vld [vmem:[#allocation10 + $0xb8] sm:$0xff]
    %v2081 = vld [vmem:[#allocation10 + $0xc0] sm:$0xff]
    %v2082 = vld [vmem:[#allocation10 + $0xc8] sm:$0xff]
    %v2083 = vld [vmem:[#allocation10 + $0xd0] sm:$0xff]
    %v2084 = vld [vmem:[#allocation10 + $0xd8] sm:$0xff]
    %v2085 = vld [vmem:[#allocation10 + $0xe0] sm:$0xff]
    %v2086 = vld [vmem:[#allocation10 + $0xe8] sm:$0xff]
    %v2087 = vld [vmem:[#allocation10 + $0xf0] sm:$0xff]
    %v2088 = vld [vmem:[#allocation10 + $0xf8] sm:$0xff]
    %v2089 = vld [vmem:[#allocation10 + $0x100] sm:$0xff]
    %v2090 = vld [vmem:[#allocation10 + $0x108] sm:$0xff]
    %v2091 = vld [vmem:[#allocation10 + $0x110] sm:$0xff]
    %v2092 = vld [vmem:[#allocation10 + $0x118] sm:$0xff]
    %v2093 = vld [vmem:[#allocation10 + $0x120] sm:$0xff]
    %v2094 = vld [vmem:[#allocation10 + $0x128] sm:$0xff]
    %v2095 = vld [vmem:[#allocation10 + $0x130] sm:$0xff]
    %v2096 = vld [vmem:[#allocation10 + $0x138] sm:$0xff]
    %v2097 = vld [vmem:[#allocation10 + $0x140] sm:$0xff]
    %v2098 = vld [vmem:[#allocation10 + $0x148] sm:$0xff]
    %v2099 = vld [vmem:[#allocation10 + $0x150] sm:$0xff]
    %v2100 = vld [vmem:[#allocation10 + $0x158] sm:$0xff]
    %v2101 = vld [vmem:[#allocation10 + $0x160] sm:$0xff]
    %v2102 = vld [vmem:[#allocation10 + $0x168] sm:$0xff]
    %v2103 = vld [vmem:[#allocation10 + $0x170] sm:$0xff]
    %v2104 = vld [vmem:[#allocation10 + $0x178] sm:$0xff]
    %v2105 = vld [vmem:[#allocation10 + $0x180] sm:$0xff]
    %v2106 = vld [vmem:[#allocation10 + $0x188] sm:$0xff]
    %v2107 = vld [vmem:[#allocation10 + $0x190] sm:$0xff]
    %v2108 = vld [vmem:[#allocation10 + $0x198] sm:$0xff]
    %v2109 = vld [vmem:[#allocation10 + $0x1a0] sm:$0xff]
    %v2110 = vld [vmem:[#allocation10 + $0x1a8] sm:$0xff]
    %v2111 = vld [vmem:[#allocation10 + $0x1b0] sm:$0xff]
    %v2112 = vld [vmem:[#allocation10 + $0x1b8] sm:$0xff]
    %v2113 = vld [vmem:[#allocation10 + $0x1c0] sm:$0xff]
    %v2114 = vld [vmem:[#allocation10 + $0x1c8] sm:$0xff]
    %v2115 = vld [vmem:[#allocation10 + $0x1d0] sm:$0xff]
    %v2116 = vld [vmem:[#allocation10 + $0x1d8] sm:$0xff]
    %v2117 = vld [vmem:[#allocation10 + $0x1e0] sm:$0xff]
    %v2118 = vld [vmem:[#allocation10 + $0x1e8] sm:$0xff]
    %v2119 = vld [vmem:[#allocation10 + $0x1f0] sm:$0xff]
    %v2120 = vld [vmem:[#allocation10 + $0x1f8] sm:$0xff]
    %v2121 = vld [vmem:[#allocation10 + $0x200] sm:$0xff]
    %v2122 = vld [vmem:[#allocation10 + $0x208] sm:$0xff]
    %v2123 = vld [vmem:[#allocation10 + $0x210] sm:$0xff]
    %v2124 = vld [vmem:[#allocation10 + $0x218] sm:$0xff]
    %v2125 = vld [vmem:[#allocation10 + $0x220] sm:$0xff]
    %v2126 = vld [vmem:[#allocation10 + $0x228] sm:$0xff]
    %v2127 = vld [vmem:[#allocation10 + $0x230] sm:$0xff]
    %v2128 = vld [vmem:[#allocation10 + $0x238] sm:$0xff]
    %v2129 = vld [vmem:[#allocation10 + $0x240] sm:$0xff]
    %v2130 = vld [vmem:[#allocation10 + $0x248] sm:$0xff]
    %v2131 = vld [vmem:[#allocation10 + $0x250] sm:$0xff]
    %v2132 = vld [vmem:[#allocation10 + $0x258] sm:$0xff]
    %v2133 = vld [vmem:[#allocation10 + $0x260] sm:$0xff]
    %v2134 = vld [vmem:[#allocation10 + $0x268] sm:$0xff]
    %v2135 = vld [vmem:[#allocation10 + $0x270] sm:$0xff]
    %v2136 = vld [vmem:[#allocation10 + $0x278] sm:$0xff]
    %v2137 = vld [vmem:[#allocation10 + $0x280] sm:$0xff]
    %v2138 = vld [vmem:[#allocation10 + $0x288] sm:$0xff]
    %v2139 = vld [vmem:[#allocation10 + $0x290] sm:$0xff]
    %v2140 = vld [vmem:[#allocation10 + $0x298] sm:$0xff]
    %v2141 = vld [vmem:[#allocation10 + $0x2a0] sm:$0xff]
    %v2142 = vld [vmem:[#allocation10 + $0x2a8] sm:$0xff]
    %v2143 = vld [vmem:[#allocation10 + $0x2b0] sm:$0xff]
    %v2144 = vld [vmem:[#allocation10 + $0x2b8] sm:$0xff]
    %v2145 = vld [vmem:[#allocation10 + $0x2c0] sm:$0xff]
    %v2146 = vld [vmem:[#allocation10 + $0x2c8] sm:$0xff]
    %v2147 = vld [vmem:[#allocation10 + $0x2d0] sm:$0xff]
    %v2148 = vld [vmem:[#allocation10 + $0x2d8] sm:$0xff]
    %v2149 = vld [vmem:[#allocation10 + $0x2e0] sm:$0xff]
    %v2150 = vld [vmem:[#allocation10 + $0x2e8] sm:$0xff]
    %v2151 = vld [vmem:[#allocation10 + $0x2f0] sm:$0xff]
    %v2152 = vld [vmem:[#allocation10 + $0x2f8] sm:$0xff]
    %v2153 = vld [vmem:[#allocation10 + $0x300] sm:$0xff]
    %v2154 = vld [vmem:[#allocation10 + $0x308] sm:$0xff]
    %v2155 = vld [vmem:[#allocation10 + $0x310] sm:$0xff]
    %v2156 = vld [vmem:[#allocation10 + $0x318] sm:$0xff]
    %v2157 = vld [vmem:[#allocation10 + $0x320] sm:$0xff]
    %v2158 = vld [vmem:[#allocation10 + $0x328] sm:$0xff]
    %v2159 = vld [vmem:[#allocation10 + $0x330] sm:$0xff]
    %v2160 = vld [vmem:[#allocation10 + $0x338] sm:$0xff]
    %v2161 = vld [vmem:[#allocation10 + $0x340] sm:$0xff]
    %v2162 = vld [vmem:[#allocation10 + $0x348] sm:$0xff]
    %v2163 = vld [vmem:[#allocation10 + $0x350] sm:$0xff]
    %v2164 = vld [vmem:[#allocation10 + $0x358] sm:$0xff]
    %v2165 = vld [vmem:[#allocation10 + $0x360] sm:$0xff]
    %v2166 = vld [vmem:[#allocation10 + $0x368] sm:$0xff]
    %v2167 = vld [vmem:[#allocation10 + $0x370] sm:$0xff]
    %v2168 = vld [vmem:[#allocation10 + $0x378] sm:$0xff]
    %v2169 = vld [vmem:[#allocation10 + $0x380] sm:$0xff]
    %v2170 = vld [vmem:[#allocation10 + $0x388] sm:$0xff]
    %v2171 = vld [vmem:[#allocation10 + $0x390] sm:$0xff]
    %v2172 = vld [vmem:[#allocation10 + $0x398] sm:$0xff]
    %v2173 = vld [vmem:[#allocation10 + $0x3a0] sm:$0xff]
    %v2174 = vld [vmem:[#allocation10 + $0x3a8] sm:$0xff]
    %v2175 = vld [vmem:[#allocation10 + $0x3b0] sm:$0xff]
    %v2176 = vld [vmem:[#allocation10 + $0x3b8] sm:$0xff]
    %v2177 = vld [vmem:[#allocation10 + $0x3c0] sm:$0xff]
    %v2178 = vld [vmem:[#allocation10 + $0x3c8] sm:$0xff]
    %v2179 = vld [vmem:[#allocation10 + $0x3d0] sm:$0xff]
    %v2180 = vld [vmem:[#allocation10 + $0x3d8] sm:$0xff]
    %v2181 = vld [vmem:[#allocation10 + $0x3e0] sm:$0xff]
    %v2182 = vld [vmem:[#allocation10 + $0x3e8] sm:$0xff]
    %v2183 = vld [vmem:[#allocation10 + $0x3f0] sm:$0xff]
    %v2184 = vld [vmem:[#allocation10 + $0x3f8] sm:$0xff]
    %v2185 = vld [vmem:[%s5] sm:$0xf]
    %v2187 = vlaneseq
    %v2188 = vshrl.u32 %v2187, 7
    %v2189 = vsub.s32 0, %v2188
    %v2190 = vrot.slane %v2185, %v2189
    %v2191 = vlaneseq
    %v2192 = vshrl.u32 %v2191, 7
    %v2193 = vsub.s32 1, %v2192
    %v2194 = vrot.slane %v2185, %v2193
    %v2195 = vlaneseq
    %v2196 = vshrl.u32 %v2195, 7
    %v2197 = vsub.s32 2, %v2196
    %v2198 = vrot.slane %v2185, %v2197
    %v2199 = vlaneseq
    %v2200 = vshrl.u32 %v2199, 7
    %v2201 = vsub.s32 3, %v2200
    %v2202 = vrot.slane %v2185, %v2201
    %v2335 = vunpack.c.l.b16 %v2057
    %v2336 = vunpack.c.h.b16 %v2057
    %v2337 = vunpack.c.l.b16 %v2058
    %v2338 = vunpack.c.h.b16 %v2058
    %v2339 = vunpack.c.l.b16 %v2059
    %v2340 = vunpack.c.h.b16 %v2059
    %v2341 = vunpack.c.l.b16 %v2060
    %v2342 = vunpack.c.h.b16 %v2060
    %v2343 = vunpack.c.l.b16 %v2061
    %v2344 = vunpack.c.h.b16 %v2061
    %v2345 = vunpack.c.l.b16 %v2062
    %v2346 = vunpack.c.h.b16 %v2062
    %v2347 = vunpack.c.l.b16 %v2063
    %v2348 = vunpack.c.h.b16 %v2063
    %v2349 = vunpack.c.l.b16 %v2064
    %v2350 = vunpack.c.h.b16 %v2064
    %v2351 = vunpack.c.l.b16 %v2065
    %v2352 = vunpack.c.h.b16 %v2065
    %v2353 = vunpack.c.l.b16 %v2066
    %v2354 = vunpack.c.h.b16 %v2066
    %v2355 = vunpack.c.l.b16 %v2067
    %v2356 = vunpack.c.h.b16 %v2067
    %v2357 = vunpack.c.l.b16 %v2068
    %v2358 = vunpack.c.h.b16 %v2068
    %v2359 = vunpack.c.l.b16 %v2069
    %v2360 = vunpack.c.h.b16 %v2069
    %v2361 = vunpack.c.l.b16 %v2070
    %v2362 = vunpack.c.h.b16 %v2070
    %v2363 = vunpack.c.l.b16 %v2071
    %v2364 = vunpack.c.h.b16 %v2071
    %v2365 = vunpack.c.l.b16 %v2072
    %v2366 = vunpack.c.h.b16 %v2072
    %v2367 = vunpack.c.l.b16 %v2073
    %v2368 = vunpack.c.h.b16 %v2073
    %v2369 = vunpack.c.l.b16 %v2074
    %v2370 = vunpack.c.h.b16 %v2074
    %v2371 = vunpack.c.l.b16 %v2075
    %v2372 = vunpack.c.h.b16 %v2075
    %v2373 = vunpack.c.l.b16 %v2076
    %v2374 = vunpack.c.h.b16 %v2076
    %v2375 = vunpack.c.l.b16 %v2077
    %v2376 = vunpack.c.h.b16 %v2077
    %v2377 = vunpack.c.l.b16 %v2078
    %v2378 = vunpack.c.h.b16 %v2078
    %v2379 = vunpack.c.l.b16 %v2079
    %v2380 = vunpack.c.h.b16 %v2079
    %v2381 = vunpack.c.l.b16 %v2080
    %v2382 = vunpack.c.h.b16 %v2080
    %v2383 = vunpack.c.l.b16 %v2081
    %v2384 = vunpack.c.h.b16 %v2081
    %v2385 = vunpack.c.l.b16 %v2082
    %v2386 = vunpack.c.h.b16 %v2082
    %v2387 = vunpack.c.l.b16 %v2083
    %v2388 = vunpack.c.h.b16 %v2083
    %v2389 = vunpack.c.l.b16 %v2084
    %v2390 = vunpack.c.h.b16 %v2084
    %v2391 = vunpack.c.l.b16 %v2085
    %v2392 = vunpack.c.h.b16 %v2085
    %v2393 = vunpack.c.l.b16 %v2086
    %v2394 = vunpack.c.h.b16 %v2086
    %v2395 = vunpack.c.l.b16 %v2087
    %v2396 = vunpack.c.h.b16 %v2087
    %v2397 = vunpack.c.l.b16 %v2088
    %v2398 = vunpack.c.h.b16 %v2088
    %v2399 = vunpack.c.l.b16 %v2089
    %v2400 = vunpack.c.h.b16 %v2089
    %v2401 = vunpack.c.l.b16 %v2090
    %v2402 = vunpack.c.h.b16 %v2090
    %v2403 = vunpack.c.l.b16 %v2091
    %v2404 = vunpack.c.h.b16 %v2091
    %v2405 = vunpack.c.l.b16 %v2092
    %v2406 = vunpack.c.h.b16 %v2092
    %v2407 = vunpack.c.l.b16 %v2093
    %v2408 = vunpack.c.h.b16 %v2093
    %v2409 = vunpack.c.l.b16 %v2094
    %v2410 = vunpack.c.h.b16 %v2094
    %v2411 = vunpack.c.l.b16 %v2095
    %v2412 = vunpack.c.h.b16 %v2095
    %v2413 = vunpack.c.l.b16 %v2096
    %v2414 = vunpack.c.h.b16 %v2096
    %v2415 = vunpack.c.l.b16 %v2097
    %v2416 = vunpack.c.h.b16 %v2097
    %v2417 = vunpack.c.l.b16 %v2098
    %v2418 = vunpack.c.h.b16 %v2098
    %v2419 = vunpack.c.l.b16 %v2099
    %v2420 = vunpack.c.h.b16 %v2099
    %v2421 = vunpack.c.l.b16 %v2100
    %v2422 = vunpack.c.h.b16 %v2100
    %v2423 = vunpack.c.l.b16 %v2101
    %v2424 = vunpack.c.h.b16 %v2101
    %v2425 = vunpack.c.l.b16 %v2102
    %v2426 = vunpack.c.h.b16 %v2102
    %v2427 = vunpack.c.l.b16 %v2103
    %v2428 = vunpack.c.h.b16 %v2103
    %v2429 = vunpack.c.l.b16 %v2104
    %v2430 = vunpack.c.h.b16 %v2104
    %v2431 = vunpack.c.l.b16 %v2105
    %v2432 = vunpack.c.h.b16 %v2105
    %v2433 = vunpack.c.l.b16 %v2106
    %v2434 = vunpack.c.h.b16 %v2106
    %v2435 = vunpack.c.l.b16 %v2107
    %v2436 = vunpack.c.h.b16 %v2107
    %v2437 = vunpack.c.l.b16 %v2108
    %v2438 = vunpack.c.h.b16 %v2108
    %v2439 = vunpack.c.l.b16 %v2109
    %v2440 = vunpack.c.h.b16 %v2109
    %v2441 = vunpack.c.l.b16 %v2110
    %v2442 = vunpack.c.h.b16 %v2110
    %v2443 = vunpack.c.l.b16 %v2111
    %v2444 = vunpack.c.h.b16 %v2111
    %v2445 = vunpack.c.l.b16 %v2112
    %v2446 = vunpack.c.h.b16 %v2112
    %v2447 = vunpack.c.l.b16 %v2113
    %v2448 = vunpack.c.h.b16 %v2113
    %v2449 = vunpack.c.l.b16 %v2114
    %v2450 = vunpack.c.h.b16 %v2114
    %v2451 = vunpack.c.l.b16 %v2115
    %v2452 = vunpack.c.h.b16 %v2115
    %v2453 = vunpack.c.l.b16 %v2116
    %v2454 = vunpack.c.h.b16 %v2116
    %v2455 = vunpack.c.l.b16 %v2117
    %v2456 = vunpack.c.h.b16 %v2117
    %v2457 = vunpack.c.l.b16 %v2118
    %v2458 = vunpack.c.h.b16 %v2118
    %v2459 = vunpack.c.l.b16 %v2119
    %v2460 = vunpack.c.h.b16 %v2119
    %v2461 = vunpack.c.l.b16 %v2120
    %v2462 = vunpack.c.h.b16 %v2120
    %v2463 = vunpack.c.l.b16 %v2121
    %v2464 = vunpack.c.h.b16 %v2121
    %v2465 = vunpack.c.l.b16 %v2122
    %v2466 = vunpack.c.h.b16 %v2122
    %v2467 = vunpack.c.l.b16 %v2123
    %v2468 = vunpack.c.h.b16 %v2123
    %v2469 = vunpack.c.l.b16 %v2124
    %v2470 = vunpack.c.h.b16 %v2124
    %v2471 = vunpack.c.l.b16 %v2125
    %v2472 = vunpack.c.h.b16 %v2125
    %v2473 = vunpack.c.l.b16 %v2126
    %v2474 = vunpack.c.h.b16 %v2126
    %v2475 = vunpack.c.l.b16 %v2127
    %v2476 = vunpack.c.h.b16 %v2127
    %v2477 = vunpack.c.l.b16 %v2128
    %v2478 = vunpack.c.h.b16 %v2128
    %v2479 = vunpack.c.l.b16 %v2129
    %v2480 = vunpack.c.h.b16 %v2129
    %v2481 = vunpack.c.l.b16 %v2130
    %v2482 = vunpack.c.h.b16 %v2130
    %v2483 = vunpack.c.l.b16 %v2131
    %v2484 = vunpack.c.h.b16 %v2131
    %v2485 = vunpack.c.l.b16 %v2132
    %v2486 = vunpack.c.h.b16 %v2132
    %v2487 = vunpack.c.l.b16 %v2133
    %v2488 = vunpack.c.h.b16 %v2133
    %v2489 = vunpack.c.l.b16 %v2134
    %v2490 = vunpack.c.h.b16 %v2134
    %v2491 = vunpack.c.l.b16 %v2135
    %v2492 = vunpack.c.h.b16 %v2135
    %v2493 = vunpack.c.l.b16 %v2136
    %v2494 = vunpack.c.h.b16 %v2136
    %v2495 = vunpack.c.l.b16 %v2137
    %v2496 = vunpack.c.h.b16 %v2137
    %v2497 = vunpack.c.l.b16 %v2138
    %v2498 = vunpack.c.h.b16 %v2138
    %v2499 = vunpack.c.l.b16 %v2139
    %v2500 = vunpack.c.h.b16 %v2139
    %v2501 = vunpack.c.l.b16 %v2140
    %v2502 = vunpack.c.h.b16 %v2140
    %v2503 = vunpack.c.l.b16 %v2141
    %v2504 = vunpack.c.h.b16 %v2141
    %v2505 = vunpack.c.l.b16 %v2142
    %v2506 = vunpack.c.h.b16 %v2142
    %v2507 = vunpack.c.l.b16 %v2143
    %v2508 = vunpack.c.h.b16 %v2143
    %v2509 = vunpack.c.l.b16 %v2144
    %v2510 = vunpack.c.h.b16 %v2144
    %v2511 = vunpack.c.l.b16 %v2145
    %v2512 = vunpack.c.h.b16 %v2145
    %v2513 = vunpack.c.l.b16 %v2146
    %v2514 = vunpack.c.h.b16 %v2146
    %v2515 = vunpack.c.l.b16 %v2147
    %v2516 = vunpack.c.h.b16 %v2147
    %v2517 = vunpack.c.l.b16 %v2148
    %v2518 = vunpack.c.h.b16 %v2148
    %v2519 = vunpack.c.l.b16 %v2149
    %v2520 = vunpack.c.h.b16 %v2149
    %v2521 = vunpack.c.l.b16 %v2150
    %v2522 = vunpack.c.h.b16 %v2150
    %v2523 = vunpack.c.l.b16 %v2151
    %v2524 = vunpack.c.h.b16 %v2151
    %v2525 = vunpack.c.l.b16 %v2152
    %v2526 = vunpack.c.h.b16 %v2152
    %v2527 = vunpack.c.l.b16 %v2153
    %v2528 = vunpack.c.h.b16 %v2153
    %v2529 = vunpack.c.l.b16 %v2154
    %v2530 = vunpack.c.h.b16 %v2154
    %v2531 = vunpack.c.l.b16 %v2155
    %v2532 = vunpack.c.h.b16 %v2155
    %v2533 = vunpack.c.l.b16 %v2156
    %v2534 = vunpack.c.h.b16 %v2156
    %v2535 = vunpack.c.l.b16 %v2157
    %v2536 = vunpack.c.h.b16 %v2157
    %v2537 = vunpack.c.l.b16 %v2158
    %v2538 = vunpack.c.h.b16 %v2158
    %v2539 = vunpack.c.l.b16 %v2159
    %v2540 = vunpack.c.h.b16 %v2159
    %v2541 = vunpack.c.l.b16 %v2160
    %v2542 = vunpack.c.h.b16 %v2160
    %v2543 = vunpack.c.l.b16 %v2161
    %v2544 = vunpack.c.h.b16 %v2161
    %v2545 = vunpack.c.l.b16 %v2162
    %v2546 = vunpack.c.h.b16 %v2162
    %v2547 = vunpack.c.l.b16 %v2163
    %v2548 = vunpack.c.h.b16 %v2163
    %v2549 = vunpack.c.l.b16 %v2164
    %v2550 = vunpack.c.h.b16 %v2164
    %v2551 = vunpack.c.l.b16 %v2165
    %v2552 = vunpack.c.h.b16 %v2165
    %v2553 = vunpack.c.l.b16 %v2166
    %v2554 = vunpack.c.h.b16 %v2166
    %v2555 = vunpack.c.l.b16 %v2167
    %v2556 = vunpack.c.h.b16 %v2167
    %v2557 = vunpack.c.l.b16 %v2168
    %v2558 = vunpack.c.h.b16 %v2168
    %v2559 = vunpack.c.l.b16 %v2169
    %v2560 = vunpack.c.h.b16 %v2169
    %v2561 = vunpack.c.l.b16 %v2170
    %v2562 = vunpack.c.h.b16 %v2170
    %v2563 = vunpack.c.l.b16 %v2171
    %v2564 = vunpack.c.h.b16 %v2171
    %v2565 = vunpack.c.l.b16 %v2172
    %v2566 = vunpack.c.h.b16 %v2172
    %v2567 = vunpack.c.l.b16 %v2173
    %v2568 = vunpack.c.h.b16 %v2173
    %v2569 = vunpack.c.l.b16 %v2174
    %v2570 = vunpack.c.h.b16 %v2174
    %v2571 = vunpack.c.l.b16 %v2175
    %v2572 = vunpack.c.h.b16 %v2175
    %v2573 = vunpack.c.l.b16 %v2176
    %v2574 = vunpack.c.h.b16 %v2176
    %v2575 = vunpack.c.l.b16 %v2177
    %v2576 = vunpack.c.h.b16 %v2177
    %v2577 = vunpack.c.l.b16 %v2178
    %v2578 = vunpack.c.h.b16 %v2178
    %v2579 = vunpack.c.l.b16 %v2179
    %v2580 = vunpack.c.h.b16 %v2179
    %v2581 = vunpack.c.l.b16 %v2180
    %v2582 = vunpack.c.h.b16 %v2180
    %v2583 = vunpack.c.l.b16 %v2181
    %v2584 = vunpack.c.h.b16 %v2181
    %v2585 = vunpack.c.l.b16 %v2182
    %v2586 = vunpack.c.h.b16 %v2182
    %v2587 = vunpack.c.l.b16 %v2183
    %v2588 = vunpack.c.h.b16 %v2183
    %v2589 = vunpack.c.l.b16 %v2184
    %v2590 = vunpack.c.h.b16 %v2184
    %v2591 = vpack.c.b16 %v2339, %v2335
    %v2592 = vpack.c.b16 %v2340, %v2336
    %v2593 = vpack.c.b16 %v2341, %v2337
    %v2594 = vpack.c.b16 %v2342, %v2338
    %v2595 = vpack.c.b16 %v2347, %v2343
    %v2596 = vpack.c.b16 %v2348, %v2344
    %v2597 = vpack.c.b16 %v2349, %v2345
    %v2598 = vpack.c.b16 %v2350, %v2346
    %v2599 = vpack.c.b16 %v2355, %v2351
    %v2600 = vpack.c.b16 %v2356, %v2352
    %v2601 = vpack.c.b16 %v2357, %v2353
    %v2602 = vpack.c.b16 %v2358, %v2354
    %v2603 = vpack.c.b16 %v2363, %v2359
    %v2604 = vpack.c.b16 %v2364, %v2360
    %v2605 = vpack.c.b16 %v2365, %v2361
    %v2606 = vpack.c.b16 %v2366, %v2362
    %v2607 = vpack.c.b16 %v2371, %v2367
    %v2608 = vpack.c.b16 %v2372, %v2368
    %v2609 = vpack.c.b16 %v2373, %v2369
    %v2610 = vpack.c.b16 %v2374, %v2370
    %v2611 = vpack.c.b16 %v2379, %v2375
    %v2612 = vpack.c.b16 %v2380, %v2376
    %v2613 = vpack.c.b16 %v2381, %v2377
    %v2614 = vpack.c.b16 %v2382, %v2378
    %v2615 = vpack.c.b16 %v2387, %v2383
    %v2616 = vpack.c.b16 %v2388, %v2384
    %v2617 = vpack.c.b16 %v2389, %v2385
    %v2618 = vpack.c.b16 %v2390, %v2386
    %v2619 = vpack.c.b16 %v2395, %v2391
    %v2620 = vpack.c.b16 %v2396, %v2392
    %v2621 = vpack.c.b16 %v2397, %v2393
    %v2622 = vpack.c.b16 %v2398, %v2394
    %v2623 = vpack.c.b16 %v2403, %v2399
    %v2624 = vpack.c.b16 %v2404, %v2400
    %v2625 = vpack.c.b16 %v2405, %v2401
    %v2626 = vpack.c.b16 %v2406, %v2402
    %v2627 = vpack.c.b16 %v2411, %v2407
    %v2628 = vpack.c.b16 %v2412, %v2408
    %v2629 = vpack.c.b16 %v2413, %v2409
    %v2630 = vpack.c.b16 %v2414, %v2410
    %v2631 = vpack.c.b16 %v2419, %v2415
    %v2632 = vpack.c.b16 %v2420, %v2416
    %v2633 = vpack.c.b16 %v2421, %v2417
    %v2634 = vpack.c.b16 %v2422, %v2418
    %v2635 = vpack.c.b16 %v2427, %v2423
    %v2636 = vpack.c.b16 %v2428, %v2424
    %v2637 = vpack.c.b16 %v2429, %v2425
    %v2638 = vpack.c.b16 %v2430, %v2426
    %v2639 = vpack.c.b16 %v2435, %v2431
    %v2640 = vpack.c.b16 %v2436, %v2432
    %v2641 = vpack.c.b16 %v2437, %v2433
    %v2642 = vpack.c.b16 %v2438, %v2434
    %v2643 = vpack.c.b16 %v2443, %v2439
    %v2644 = vpack.c.b16 %v2444, %v2440
    %v2645 = vpack.c.b16 %v2445, %v2441
    %v2646 = vpack.c.b16 %v2446, %v2442
    %v2647 = vpack.c.b16 %v2451, %v2447
    %v2648 = vpack.c.b16 %v2452, %v2448
    %v2649 = vpack.c.b16 %v2453, %v2449
    %v2650 = vpack.c.b16 %v2454, %v2450
    %v2651 = vpack.c.b16 %v2459, %v2455
    %v2652 = vpack.c.b16 %v2460, %v2456
    %v2653 = vpack.c.b16 %v2461, %v2457
    %v2654 = vpack.c.b16 %v2462, %v2458
    %v2655 = vpack.c.b16 %v2467, %v2463
    %v2656 = vpack.c.b16 %v2468, %v2464
    %v2657 = vpack.c.b16 %v2469, %v2465
    %v2658 = vpack.c.b16 %v2470, %v2466
    %v2659 = vpack.c.b16 %v2475, %v2471
    %v2660 = vpack.c.b16 %v2476, %v2472
    %v2661 = vpack.c.b16 %v2477, %v2473
    %v2662 = vpack.c.b16 %v2478, %v2474
    %v2663 = vpack.c.b16 %v2483, %v2479
    %v2664 = vpack.c.b16 %v2484, %v2480
    %v2665 = vpack.c.b16 %v2485, %v2481
    %v2666 = vpack.c.b16 %v2486, %v2482
    %v2667 = vpack.c.b16 %v2491, %v2487
    %v2668 = vpack.c.b16 %v2492, %v2488
    %v2669 = vpack.c.b16 %v2493, %v2489
    %v2670 = vpack.c.b16 %v2494, %v2490
    %v2671 = vpack.c.b16 %v2499, %v2495
    %v2672 = vpack.c.b16 %v2500, %v2496
    %v2673 = vpack.c.b16 %v2501, %v2497
    %v2674 = vpack.c.b16 %v2502, %v2498
    %v2675 = vpack.c.b16 %v2507, %v2503
    %v2676 = vpack.c.b16 %v2508, %v2504
    %v2677 = vpack.c.b16 %v2509, %v2505
    %v2678 = vpack.c.b16 %v2510, %v2506
    %v2679 = vpack.c.b16 %v2515, %v2511
    %v2680 = vpack.c.b16 %v2516, %v2512
    %v2681 = vpack.c.b16 %v2517, %v2513
    %v2682 = vpack.c.b16 %v2518, %v2514
    %v2683 = vpack.c.b16 %v2523, %v2519
    %v2684 = vpack.c.b16 %v2524, %v2520
    %v2685 = vpack.c.b16 %v2525, %v2521
    %v2686 = vpack.c.b16 %v2526, %v2522
    %v2687 = vpack.c.b16 %v2531, %v2527
    %v2688 = vpack.c.b16 %v2532, %v2528
    %v2689 = vpack.c.b16 %v2533, %v2529
    %v2690 = vpack.c.b16 %v2534, %v2530
    %v2691 = vpack.c.b16 %v2539, %v2535
    %v2692 = vpack.c.b16 %v2540, %v2536
    %v2693 = vpack.c.b16 %v2541, %v2537
    %v2694 = vpack.c.b16 %v2542, %v2538
    %v2695 = vpack.c.b16 %v2547, %v2543
    %v2696 = vpack.c.b16 %v2548, %v2544
    %v2697 = vpack.c.b16 %v2549, %v2545
    %v2698 = vpack.c.b16 %v2550, %v2546
    %v2699 = vpack.c.b16 %v2555, %v2551
    %v2700 = vpack.c.b16 %v2556, %v2552
    %v2701 = vpack.c.b16 %v2557, %v2553
    %v2702 = vpack.c.b16 %v2558, %v2554
    %v2703 = vpack.c.b16 %v2563, %v2559
    %v2704 = vpack.c.b16 %v2564, %v2560
    %v2705 = vpack.c.b16 %v2565, %v2561
    %v2706 = vpack.c.b16 %v2566, %v2562
    %v2707 = vpack.c.b16 %v2571, %v2567
    %v2708 = vpack.c.b16 %v2572, %v2568
    %v2709 = vpack.c.b16 %v2573, %v2569
    %v2710 = vpack.c.b16 %v2574, %v2570
    %v2711 = vpack.c.b16 %v2579, %v2575
    %v2712 = vpack.c.b16 %v2580, %v2576
    %v2713 = vpack.c.b16 %v2581, %v2577
    %v2714 = vpack.c.b16 %v2582, %v2578
    %v2715 = vpack.c.b16 %v2587, %v2583
    %v2716 = vpack.c.b16 %v2588, %v2584
    %v2717 = vpack.c.b16 %v2589, %v2585
    %v2718 = vpack.c.b16 %v2590, %v2586
    %2847 = vmatprep.subr.bf16.mxu0 %v2592
    %2848 = vmatpush1.bf16.msra.mxu0 %v2591
    %2849 = vmatprep.subr.bf16.mxu0 %v2596
    %2850 = vmatpush1.bf16.msra.mxu0 %v2595
    %2851 = vmatprep.subr.bf16.mxu0 %v2600
    %2852 = vmatpush1.bf16.msra.mxu0 %v2599
    %2853 = vmatprep.subr.bf16.mxu0 %v2604
    %2854 = vmatpush1.bf16.msra.mxu0 %v2603
    %2855 = vmatprep.subr.bf16.mxu0 %v2608
    %2856 = vmatpush1.bf16.msra.mxu0 %v2607
    %2857 = vmatprep.subr.bf16.mxu0 %v2612
    %2858 = vmatpush1.bf16.msra.mxu0 %v2611
    %2859 = vmatprep.subr.bf16.mxu0 %v2616
    %2860 = vmatpush1.bf16.msra.mxu0 %v2615
    %2861 = vmatprep.subr.bf16.mxu0 %v2620
    %2862 = vmatpush1.bf16.msra.mxu0 %v2619
    %2863 = vmatprep.subr.bf16.mxu0 %v2624
    %2864 = vmatpush1.bf16.msra.mxu0 %v2623
    %2865 = vmatprep.subr.bf16.mxu0 %v2628
    %2866 = vmatpush1.bf16.msra.mxu0 %v2627
    %2867 = vmatprep.subr.bf16.mxu0 %v2632
    %2868 = vmatpush1.bf16.msra.mxu0 %v2631
    %2869 = vmatprep.subr.bf16.mxu0 %v2636
    %2870 = vmatpush1.bf16.msra.mxu0 %v2635
    %2871 = vmatprep.subr.bf16.mxu0 %v2640
    %2872 = vmatpush1.bf16.msra.mxu0 %v2639
    %2873 = vmatprep.subr.bf16.mxu0 %v2644
    %2874 = vmatpush1.bf16.msra.mxu0 %v2643
    %2875 = vmatprep.subr.bf16.mxu0 %v2648
    %2876 = vmatpush1.bf16.msra.mxu0 %v2647
    %2877 = vmatprep.subr.bf16.mxu0 %v2652
    %2878 = vmatpush1.bf16.msra.mxu0 %v2651
    %2879 = vmatprep.mubr.bf16.mxu0 %v2054
    %2880 = vmatmul.mubr.bf16.gmra.mrb[0].mxu0 %v2053
    %v2881 = vpop.f32.mrb[0].mxu0
    %v2882 = vadd.f32 %v2190, %v2881
    %v2883 = vpop.f32.mrb[0].mxu0
    %v2884 = vadd.f32 %v2194, %v2883
    %v2885 = vpop.f32.mrb[0].mxu0
    %v2886 = vadd.f32 %v2190, %v2885
    %v2887 = vpop.f32.mrb[0].mxu0
    %v2888 = vadd.f32 %v2194, %v2887
    %2889 = vdwg.mxu0
    %2890 = vmatprep.subr.bf16.mxu0 %v2656
    %2891 = vmatpush1.bf16.msra.mxu0 %v2655
    %2892 = vmatprep.subr.bf16.mxu0 %v2660
    %2893 = vmatpush1.bf16.msra.mxu0 %v2659
    %2894 = vmatprep.subr.bf16.mxu0 %v2664
    %2895 = vmatpush1.bf16.msra.mxu0 %v2663
    %2896 = vmatprep.subr.bf16.mxu0 %v2668
    %2897 = vmatpush1.bf16.msra.mxu0 %v2667
    %2898 = vmatprep.subr.bf16.mxu0 %v2672
    %2899 = vmatpush1.bf16.msra.mxu0 %v2671
    %2900 = vmatprep.subr.bf16.mxu0 %v2676
    %2901 = vmatpush1.bf16.msra.mxu0 %v2675
    %2902 = vmatprep.subr.bf16.mxu0 %v2680
    %2903 = vmatpush1.bf16.msra.mxu0 %v2679
    %2904 = vmatprep.subr.bf16.mxu0 %v2684
    %2905 = vmatpush1.bf16.msra.mxu0 %v2683
    %2906 = vmatprep.subr.bf16.mxu0 %v2688
    %2907 = vmatpush1.bf16.msra.mxu0 %v2687
    %2908 = vmatprep.subr.bf16.mxu0 %v2692
    %2909 = vmatpush1.bf16.msra.mxu0 %v2691
    %2910 = vmatprep.subr.bf16.mxu0 %v2696
    %2911 = vmatpush1.bf16.msra.mxu0 %v2695
    %2912 = vmatprep.subr.bf16.mxu0 %v2700
    %2913 = vmatpush1.bf16.msra.mxu0 %v2699
    %2914 = vmatprep.subr.bf16.mxu0 %v2704
    %2915 = vmatpush1.bf16.msra.mxu0 %v2703
    %2916 = vmatprep.subr.bf16.mxu0 %v2708
    %2917 = vmatpush1.bf16.msra.mxu0 %v2707
    %2918 = vmatprep.subr.bf16.mxu0 %v2712
    %2919 = vmatpush1.bf16.msra.mxu0 %v2711
    %2920 = vmatprep.subr.bf16.mxu0 %v2716
    %2921 = vmatpush1.bf16.msra.mxu0 %v2715
    %2922 = vmatprep.mubr.bf16.mxu0 %v2056
    %2923 = vmatmul.mubr.bf16.gmra.mrb[0].mxu0 %v2055
    %v2924 = vpop.f32.mrb[0].mxu0
    %v2925 = vadd.f32 %v2882, %v2924
    %v2926 = vpop.f32.mrb[0].mxu0
    %v2927 = vadd.f32 %v2884, %v2926
    %v2928 = vpop.f32.mrb[0].mxu0
    %v2929 = vadd.f32 %v2886, %v2928
    %v2930 = vpop.f32.mrb[0].mxu0
    %v2931 = vadd.f32 %v2888, %v2930
    %2932 = vdwg.mxu0
    %2933 = vmatprep.subr.bf16.mxu0 %v2594
    %2934 = vmatpush1.bf16.msra.mxu0 %v2593
    %2935 = vmatprep.subr.bf16.mxu0 %v2598
    %2936 = vmatpush1.bf16.msra.mxu0 %v2597
    %2937 = vmatprep.subr.bf16.mxu0 %v2602
    %2938 = vmatpush1.bf16.msra.mxu0 %v2601
    %2939 = vmatprep.subr.bf16.mxu0 %v2606
    %2940 = vmatpush1.bf16.msra.mxu0 %v2605
    %2941 = vmatprep.subr.bf16.mxu0 %v2610
    %2942 = vmatpush1.bf16.msra.mxu0 %v2609
    %2943 = vmatprep.subr.bf16.mxu0 %v2614
    %2944 = vmatpush1.bf16.msra.mxu0 %v2613
    %2945 = vmatprep.subr.bf16.mxu0 %v2618
    %2946 = vmatpush1.bf16.msra.mxu0 %v2617
    %2947 = vmatprep.subr.bf16.mxu0 %v2622
    %2948 = vmatpush1.bf16.msra.mxu0 %v2621
    %2949 = vmatprep.subr.bf16.mxu0 %v2626
    %2950 = vmatpush1.bf16.msra.mxu0 %v2625
    %2951 = vmatprep.subr.bf16.mxu0 %v2630
    %2952 = vmatpush1.bf16.msra.mxu0 %v2629
    %2953 = vmatprep.subr.bf16.mxu0 %v2634
    %2954 = vmatpush1.bf16.msra.mxu0 %v2633
    %2955 = vmatprep.subr.bf16.mxu0 %v2638
    %2956 = vmatpush1.bf16.msra.mxu0 %v2637
    %2957 = vmatprep.subr.bf16.mxu0 %v2642
    %2958 = vmatpush1.bf16.msra.mxu0 %v2641
    %2959 = vmatprep.subr.bf16.mxu0 %v2646
    %2960 = vmatpush1.bf16.msra.mxu0 %v2645
    %2961 = vmatprep.subr.bf16.mxu0 %v2650
    %2962 = vmatpush1.bf16.msra.mxu0 %v2649
    %2963 = vmatprep.subr.bf16.mxu0 %v2654
    %2964 = vmatpush1.bf16.msra.mxu0 %v2653
    %2965 = vmatprep.mubr.bf16.mxu0 %v2054
    %2966 = vmatmul.mubr.bf16.gmra.mrb[0].mxu0 %v2053
    %v2967 = vpop.f32.mrb[0].mxu0
    %v2968 = vadd.f32 %v2198, %v2967
    %v2969 = vpop.f32.mrb[0].mxu0
    %v2970 = vadd.f32 %v2202, %v2969
    %v2971 = vpop.f32.mrb[0].mxu0
    %v2972 = vadd.f32 %v2198, %v2971
    %v2973 = vpop.f32.mrb[0].mxu0
    %v2974 = vadd.f32 %v2202, %v2973
    %2975 = vdwg.mxu0
    %2976 = vmatprep.subr.bf16.mxu0 %v2658
    %2977 = vmatpush1.bf16.msra.mxu0 %v2657
    %2978 = vmatprep.subr.bf16.mxu0 %v2662
    %2979 = vmatpush1.bf16.msra.mxu0 %v2661
    %2980 = vmatprep.subr.bf16.mxu0 %v2666
    %2981 = vmatpush1.bf16.msra.mxu0 %v2665
    %2982 = vmatprep.subr.bf16.mxu0 %v2670
    %2983 = vmatpush1.bf16.msra.mxu0 %v2669
    %2984 = vmatprep.subr.bf16.mxu0 %v2674
    %2985 = vmatpush1.bf16.msra.mxu0 %v2673
    %2986 = vmatprep.subr.bf16.mxu0 %v2678
    %2987 = vmatpush1.bf16.msra.mxu0 %v2677
    %2988 = vmatprep.subr.bf16.mxu0 %v2682
    %2989 = vmatpush1.bf16.msra.mxu0 %v2681
    %2990 = vmatprep.subr.bf16.mxu0 %v2686
    %2991 = vmatpush1.bf16.msra.mxu0 %v2685
    %2992 = vmatprep.subr.bf16.mxu0 %v2690
    %2993 = vmatpush1.bf16.msra.mxu0 %v2689
    %2994 = vmatprep.subr.bf16.mxu0 %v2694
    %2995 = vmatpush1.bf16.msra.mxu0 %v2693
    %2996 = vmatprep.subr.bf16.mxu0 %v2698
    %2997 = vmatpush1.bf16.msra.mxu0 %v2697
    %2998 = vmatprep.subr.bf16.mxu0 %v2702
    %2999 = vmatpush1.bf16.msra.mxu0 %v2701
    %3000 = vmatprep.subr.bf16.mxu0 %v2706
    %3001 = vmatpush1.bf16.msra.mxu0 %v2705
    %3002 = vmatprep.subr.bf16.mxu0 %v2710
    %3003 = vmatpush1.bf16.msra.mxu0 %v2709
    %3004 = vmatprep.subr.bf16.mxu0 %v2714
    %3005 = vmatpush1.bf16.msra.mxu0 %v2713
    %3006 = vmatprep.subr.bf16.mxu0 %v2718
    %3007 = vmatpush1.bf16.msra.mxu0 %v2717
    %3008 = vmatprep.mubr.bf16.mxu0 %v2056
    %3009 = vmatmul.mubr.bf16.gmra.mrb[0].mxu0 %v2055
    %v3010 = vpop.f32.mrb[0].mxu0
    %v3011 = vadd.f32 %v2968, %v3010
    %v3012 = vpop.f32.mrb[0].mxu0
    %v3013 = vadd.f32 %v2970, %v3012
    %v3014 = vpop.f32.mrb[0].mxu0
    %v3015 = vadd.f32 %v2972, %v3014
    %v3016 = vpop.f32.mrb[0].mxu0
    %v3017 = vadd.f32 %v2974, %v3016
    %3018 = vdwg.mxu0
    %s3019 = sld [smem:[#allocation3]]
    %vm3020 = vcmp.gt.f32.partialorder %v2925, 0.0
    %vm3021 = vcmp.gt.f32.partialorder %v2927, 0.0
    %vm3022 = vcmp.gt.f32.partialorder %v3011, 0.0
    %vm3023 = vcmp.gt.f32.partialorder %v3013, 0.0
    %vm3024 = vcmp.gt.f32.partialorder %v2929, 0.0
    %vm3025 = vcmp.gt.f32.partialorder %v2931, 0.0
    %vm3026 = vcmp.gt.f32.partialorder %v3015, 0.0
    %vm3027 = vcmp.gt.f32.partialorder %v3017, 0.0
    %v3028 = vstv %s3019
    %v3029 = vmul.f32 %v3028, %v2925
    %v3030 = vmul.f32 %v3028, %v2927
    %v3031 = vmul.f32 %v3028, %v3011
    %v3032 = vmul.f32 %v3028, %v3013
    %v3033 = vmul.f32 %v3028, %v2929
    %v3034 = vmul.f32 %v3028, %v2931
    %v3035 = vmul.f32 %v3028, %v3015
    %v3036 = vmul.f32 %v3028, %v3017
    %v3037 = vsel %vm3020, %v2925, %v3029
    %v3038 = vsel %vm3021, %v2927, %v3030
    %v3039 = vsel %vm3022, %v3011, %v3031
    %v3040 = vsel %vm3023, %v3013, %v3032
    %v3041 = vsel %vm3024, %v2929, %v3033
    %v3042 = vsel %vm3025, %v2931, %v3034
    %v3043 = vsel %vm3026, %v3015, %v3035
    %v3044 = vsel %vm3027, %v3017, %v3036
    %v3045 = vld [vmem:[%s7] sm:$0xf]
    %s3046 = sld [smem:[#allocation4]]
    %v3047 = vstv %s3046
    %v3049 = vlaneseq
    %v3050 = vshrl.u32 %v3049, 7
    %v3051 = vsub.s32 0, %v3050
    %v3052 = vrot.slane %v3045, %v3051
    %v3053 = vlaneseq
    %v3054 = vshrl.u32 %v3053, 7
    %v3055 = vsub.s32 1, %v3054
    %v3056 = vrot.slane %v3045, %v3055
    %v3057 = vlaneseq
    %v3058 = vshrl.u32 %v3057, 7
    %v3059 = vsub.s32 2, %v3058
    %v3060 = vrot.slane %v3045, %v3059
    %v3061 = vlaneseq
    %v3062 = vshrl.u32 %v3061, 7
    %v3063 = vsub.s32 3, %v3062
    %v3064 = vrot.slane %v3045, %v3063
    %3069 = vmatprep.subr.mxu0 %v3038
    %3070 = vmatpush1.xpose.msra.mxu0 %v3037
    %3071 = vmatprep.subr.mxu0 %v3042
    %3072 = vmatpush1.xpose.msra.mxu0 %v3041
    %3073 = vmatprep.subr.mxu0 0.0
    %3074 = vmatpush1.xpose.msra.mxu0 0.0
    %3075 = vmatprep.subr.mxu0 0.0
    %3076 = vmatpush1.xpose.msra.mxu0 0.0
    %3077 = vmatprep.subr.mxu0 0.0
    %3078 = vmatpush1.xpose.msra.mxu0 0.0
    %3079 = vmatprep.subr.mxu0 0.0
    %3080 = vmatpush1.xpose.msra.mxu0 0.0
    %3081 = vmatprep.subr.mxu0 0.0
    %3082 = vmatpush1.xpose.msra.mxu0 0.0
    %3083 = vmatprep.subr.mxu0 0.0
    %3084 = vmatpush1.xpose.msra.mxu0 0.0
    %3085 = vmatprep.subr.mxu0 0.0
    %3086 = vmatpush1.xpose.msra.mxu0 0.0
    %3087 = vmatprep.subr.mxu0 0.0
    %3088 = vmatpush1.xpose.msra.mxu0 0.0
    %3089 = vmatprep.subr.mxu0 0.0
    %3090 = vmatpush1.xpose.msra.mxu0 0.0
    %3091 = vmatprep.subr.mxu0 0.0
    %3092 = vmatpush1.xpose.msra.mxu0 0.0
    %3093 = vmatprep.subr.mxu0 0.0
    %3094 = vmatpush1.xpose.msra.mxu0 0.0
    %3095 = vmatprep.subr.mxu0 0.0
    %3096 = vmatpush1.xpose.msra.mxu0 0.0
    %3097 = vmatprep.subr.mxu0 0.0
    %3098 = vmatpush1.xpose.msra.mxu0 0.0
    %3099 = vmatprep.subr.mxu0 0.0
    %3100 = vmatpush1.xpose.msra.mxu0 0.0
    %3101 = vmatprep.subr.mxu0 0.0
    %3102 = vmatpush1.xpose.msra.mxu0 0.0
    %3103 = vmatprep.subr.mxu0 0.0
    %3104 = vmatpush1.xpose.msra.mxu0 0.0
    %3105 = vmatprep.subr.mxu0 0.0
    %3106 = vmatpush1.xpose.msra.mxu0 0.0
    %3107 = vmatprep.subr.mxu0 0.0
    %3108 = vmatpush1.xpose.msra.mxu0 0.0
    %3109 = vmatprep.subr.mxu0 0.0
    %3110 = vmatpush1.xpose.msra.mxu0 0.0
    %3111 = vmatprep.subr.mxu0 0.0
    %3112 = vmatpush1.xpose.msra.mxu0 0.0
    %3113 = vmatprep.subr.mxu0 0.0
    %3114 = vmatpush1.xpose.msra.mxu0 0.0
    %3115 = vmatprep.subr.mxu0 0.0
    %3116 = vmatpush1.xpose.msra.mxu0 0.0
    %3117 = vmatprep.subr.mxu0 0.0
    %3118 = vmatpush1.xpose.msra.mxu0 0.0
    %3119 = vmatprep.subr.mxu0 0.0
    %3120 = vmatpush1.xpose.msra.mxu0 0.0
    %3121 = vmatprep.subr.mxu0 0.0
    %3122 = vmatpush1.xpose.msra.mxu0 0.0
    %3123 = vmatprep.subr.mxu0 0.0
    %3124 = vmatpush1.xpose.msra.mxu0 0.0
    %3125 = vmatprep.subr.mxu0 0.0
    %3126 = vmatpush1.xpose.msra.mxu0 0.0
    %3127 = vmatprep.subr.mxu0 0.0
    %3128 = vmatpush1.xpose.msra.mxu0 0.0
    %3129 = vmatprep.subr.mxu0 0.0
    %3130 = vmatpush1.xpose.msra.mxu0 0.0
    %3131 = vmatprep.subr.mxu0 0.0
    %3132 = vmatpush1.xpose.msra.mxu0 0.0
    %3133 = vmatprep.mubr.f32.mxu0 %v3056
    %3134 = vmatmul.mubr.f32.gmra.mrb[0].mxu0 %v3052
    %v3135 = vpop.f32.mrb[0].mxu0
    %v3136 = vadd.f32 %v3047, %v3135
    %v3137 = vpop.f32.mrb[0].mxu0
    %3138 = vdwg.mxu0
    %3139 = vmatprep.subr.mxu0 %v3040
    %3140 = vmatpush1.xpose.msra.mxu0 %v3039
    %3141 = vmatprep.subr.mxu0 %v3044
    %3142 = vmatpush1.xpose.msra.mxu0 %v3043
    %3143 = vmatprep.subr.mxu0 0.0
    %3144 = vmatpush1.xpose.msra.mxu0 0.0
    %3145 = vmatprep.subr.mxu0 0.0
    %3146 = vmatpush1.xpose.msra.mxu0 0.0
    %3147 = vmatprep.subr.mxu0 0.0
    %3148 = vmatpush1.xpose.msra.mxu0 0.0
    %3149 = vmatprep.subr.mxu0 0.0
    %3150 = vmatpush1.xpose.msra.mxu0 0.0
    %3151 = vmatprep.subr.mxu0 0.0
    %3152 = vmatpush1.xpose.msra.mxu0 0.0
    %3153 = vmatprep.subr.mxu0 0.0
    %3154 = vmatpush1.xpose.msra.mxu0 0.0
    %3155 = vmatprep.subr.mxu0 0.0
    %3156 = vmatpush1.xpose.msra.mxu0 0.0
    %3157 = vmatprep.subr.mxu0 0.0
    %3158 = vmatpush1.xpose.msra.mxu0 0.0
    %3159 = vmatprep.subr.mxu0 0.0
    %3160 = vmatpush1.xpose.msra.mxu0 0.0
    %3161 = vmatprep.subr.mxu0 0.0
    %3162 = vmatpush1.xpose.msra.mxu0 0.0
    %3163 = vmatprep.subr.mxu0 0.0
    %3164 = vmatpush1.xpose.msra.mxu0 0.0
    %3165 = vmatprep.subr.mxu0 0.0
    %3166 = vmatpush1.xpose.msra.mxu0 0.0
    %3167 = vmatprep.subr.mxu0 0.0
    %3168 = vmatpush1.xpose.msra.mxu0 0.0
    %3169 = vmatprep.subr.mxu0 0.0
    %3170 = vmatpush1.xpose.msra.mxu0 0.0
    %3171 = vmatprep.subr.mxu0 0.0
    %3172 = vmatpush1.xpose.msra.mxu0 0.0
    %3173 = vmatprep.subr.mxu0 0.0
    %3174 = vmatpush1.xpose.msra.mxu0 0.0
    %3175 = vmatprep.subr.mxu0 0.0
    %3176 = vmatpush1.xpose.msra.mxu0 0.0
    %3177 = vmatprep.subr.mxu0 0.0
    %3178 = vmatpush1.xpose.msra.mxu0 0.0
    %3179 = vmatprep.subr.mxu0 0.0
    %3180 = vmatpush1.xpose.msra.mxu0 0.0
    %3181 = vmatprep.subr.mxu0 0.0
    %3182 = vmatpush1.xpose.msra.mxu0 0.0
    %3183 = vmatprep.subr.mxu0 0.0
    %3184 = vmatpush1.xpose.msra.mxu0 0.0
    %3185 = vmatprep.subr.mxu0 0.0
    %3186 = vmatpush1.xpose.msra.mxu0 0.0
    %3187 = vmatprep.subr.mxu0 0.0
    %3188 = vmatpush1.xpose.msra.mxu0 0.0
    %3189 = vmatprep.subr.mxu0 0.0
    %3190 = vmatpush1.xpose.msra.mxu0 0.0
    %3191 = vmatprep.subr.mxu0 0.0
    %3192 = vmatpush1.xpose.msra.mxu0 0.0
    %3193 = vmatprep.subr.mxu0 0.0
    %3194 = vmatpush1.xpose.msra.mxu0 0.0
    %3195 = vmatprep.subr.mxu0 0.0
    %3196 = vmatpush1.xpose.msra.mxu0 0.0
    %3197 = vmatprep.subr.mxu0 0.0
    %3198 = vmatpush1.xpose.msra.mxu0 0.0
    %3199 = vmatprep.subr.mxu0 0.0
    %3200 = vmatpush1.xpose.msra.mxu0 0.0
    %3201 = vmatprep.subr.mxu0 0.0
    %3202 = vmatpush1.xpose.msra.mxu0 0.0
    %3203 = vmatprep.mubr.f32.mxu0 %v3064
    %3204 = vmatmul.mubr.f32.gmra.mrb[0].mxu0 %v3060
    %v3205 = vpop.f32.mrb[0].mxu0
    %v3206 = vadd.f32 %v3136, %v3205
    %v3207 = vpop.f32.mrb[0].mxu0
    %3208 = vdwg.mxu0
    %vm3209 = vcmask 122880
    %3210 = vst.msk [vmem:[#allocation11] sm:$0x1] %vm3209, %v3206
    // Predicated region
    $region50: #{tpu_custom_call.1} parent=1 // pred_check
      _
    $region51: #{tpu_custom_call.1} parent=1 // pred_check_branch
      %3212 = sbr.rel (0) target = $region53
    $region52: #{tpu_custom_call.1} parent=1 // pred_region
      %s3214 = ssub.s32 16, 16
      %3215 = vsyncadd [#allocation7], %s3214
      %s3217 = sshll.u32 [#allocation11], 4
      %s3218 = int_to_ptr.vmem [resolvable:$true] %s3217
      %3220 = dma.vmem_to_hbm [thread:$0]  %s3218, 16, %s9, [#allocation7]
    $region53: #{tpu_custom_call.1} parent=1 // pred_fallthru
      _
    // Predicated region
    $region54: #{tpu_custom_call.1} parent=1 // pred_check
      _
    $region55: #{tpu_custom_call.1} parent=1 // pred_check_branch
      %3222 = sbr.rel (0) target = $region57
    $region56: #{tpu_custom_call.1} parent=1 // pred_region
      %3223 = dma.done [#allocation7], 16
    $region57: #{tpu_custom_call.1} parent=1 // pred_fallthru
      _
    %3224 = vsyncpa [#allocation6], 1
    %3225 = vsyncpa [#allocation9], 1
    %3226 = vsyncpa [#allocation7], 1

</llo_original>
